<compile_context>
chip_gen: v5e
topology: v5e:2x2
jax: 0.10.0
libtpu: 0.0.40
codegen_flags: <defaults>
</compile_context>

<pallas_src>
import functools
import math

import jax
import jax.numpy as jnp
from jax.experimental import pallas as pl
from jax.experimental.pallas import tpu as pltpu


def _round_up(v, m):
    return -(-v // m) * m


def _dot_t(a, b):
    # a[m,k] contracted with b[n,k] -> [m,n] without materializing b.T
    return jax.lax.dot_general(a, b, (((1,), (1,)), ((), ())),
                               preferred_element_type=jnp.float32)


def _transform_kernel(x_ref, g_ref, p1_ref, p2_ref, p3_ref, out_ref, *,
                      C, H1, edge_dim, fins, pad):
    scale = 1.0 / math.sqrt(C)
    g = g_ref[...]                               # [1+edge_dim, N, N]
    nb = g[0]                                    # 0 on edges, -1e30 off
    A = [g[1 + d] for d in range(edge_dim)]      # static unpack (edge_dim == 2)

    def layer(x, p_ref, fin, heads, apply_act):
        seg = heads * pad                        # 128-lane aligned segment width
        W = p_ref[0:fin, :]                      # [fin, 4*seg]  fused q|k|v|skip
        b = p_ref[fin:fin + 1, :]                # [1, 4*seg]    fused bias
        we = p_ref[fin + 1:fin + 1 + edge_dim, 0:seg]   # [edge_dim, seg]

        # Single wide MXU pass for all four projections.
        proj = jnp.dot(x, W, preferred_element_type=jnp.float32) + b
        q = proj[:, 0 * seg:1 * seg] * scale     # fold 1/sqrt(C) into q; aligned slices
        k = proj[:, 1 * seg:2 * seg]
        v = proj[:, 2 * seg:3 * seg]
        skip = proj[:, 3 * seg:4 * seg]

        head_outs = []
        for h in range(heads):                   # static tiny head loop (H <= 2)
            sl = slice(h * pad, (h + 1) * pad)   # vreg-aligned head slice
            qh, kh, vh, weh = q[:, sl], k[:, sl], v[:, sl], we[:, sl]

            # scores: both node and edge terms on the MXU (no cross-lane reduces)
            score = _dot_t(qh, kh)               # [N, N]   q_i . k_j
            qe = _dot_t(qh, weh)                 # [N, edge_dim]  q_i . W_e[:,d]
            for d in range(edge_dim):
                score = score + qe[:, d:d + 1] * A[d]
            score = score + nb                   # additive mask

            # masked softmax; clamp keeps isolated-node rows at alpha = 0
            m = jnp.maximum(jnp.max(score, axis=1, keepdims=True), -1e20)
            p = jnp.exp(score - m)
            denom = jnp.sum(p, axis=1, keepdims=True)
            inv = pl.reciprocal(jnp.where(denom > 0, denom, jnp.ones_like(denom)),
                                approx=False)
            alpha = p * inv                      # [N_dst, N_src]

            # aggregation: alpha @ v  +  (sum_j alpha_ij a_ij) @ W_e  (one MXU op)
            out_h = jnp.dot(alpha, vh, preferred_element_type=jnp.float32)  # [N, pad]
            wa = jnp.concatenate(
                [jnp.sum(alpha * A[d], axis=1, keepdims=True) for d in range(edge_dim)],
                axis=1)                                                      # [N, edge_dim]
            out_h = out_h + jnp.dot(wa, weh, preferred_element_type=jnp.float32)
            head_outs.append(out_h + skip[:, sl])                            # root weight

        # 128-wide chunks -> concat is vreg placement, no lane shuffle
        res = head_outs[0] if heads == 1 else jnp.concatenate(head_outs, axis=-1)
        if apply_act:
            res = jnp.where(res >= 0, res, 0.01 * res)                       # leaky_relu
        return res

    h = layer(x_ref[...], p1_ref, fins[0], H1, True)     # [N, H1*pad]
    h = layer(h, p2_ref, fins[1], 1, True)               # [N, pad]
    h = layer(h, p3_ref, fins[2], 1, False)              # [N, pad]
    out_ref[...] = h                                     # single unmasked lane-dense store


def init_tconv_params(key, fin, heads, c, edge_dim=2):
    hc = heads * c
    ks = jax.random.split(key, 9)
    s = 0.1
    norm = lambda k, shp: jax.random.normal(k, shp, jnp.float32) * s
    return dict(
        wq=norm(ks[0], (fin, hc)), bq=norm(ks[1], (1, hc)),
        wk=norm(ks[2], (fin, hc)), bk=norm(ks[3], (1, hc)),
        wv=norm(ks[4], (fin, hc)), bv=norm(ks[5], (1, hc)),
        we=norm(ks[6], (edge_dim, hc)),
        ws=norm(ks[7], (fin, hc)), bs=norm(ks[8], (1, hc)),
    )


def _lane_pad_heads(w, heads, c, pad):
    # [rows, heads*c] -> [rows, heads*pad]; head h real data at lanes [h*pad : h*pad+c].
    rows = w.shape[0]
    out = jnp.zeros((rows, heads * pad), jnp.float32)
    for h in range(heads):
        out = out.at[:, h * pad:h * pad + c].set(w[:, h * c:(h + 1) * c])
    return out


def _row_pad_heads(w, in_heads, c, pad):
    # [in_heads*c, cols] -> [in_heads*pad, cols]; rows placed to match the
    # lane-padded activation layout of the previous layer.
    cols = w.shape[1]
    out = jnp.zeros((in_heads * pad, cols), jnp.float32)
    for h in range(in_heads):
        out = out.at[h * pad:h * pad + c, :].set(w[h * c:(h + 1) * c, :])
    return out


def pack_layer_params(p, heads, c, edge_dim, pad, in_pad_heads=None):
    """One VMEM buffer per layer:
         rows [0:fin]                  fused (q|k|v|skip) weight, head-lane-padded
         row  [fin]                    fused bias
         rows [fin+1 : fin+1+edge_dim] W_e (head-lane-padded) in cols [0:heads*pad]
    """
    lane = lambda a: _lane_pad_heads(a, heads, c, pad)
    W = jnp.concatenate([lane(p['wq']), lane(p['wk']), lane(p['wv']), lane(p['ws'])], axis=1)
    B = jnp.concatenate([lane(p['bq']), lane(p['bk']), lane(p['bv']), lane(p['bs'])], axis=1)
    WE = lane(p['we'])
    if in_pad_heads is not None:                 # consume a lane-padded activation directly
        W = _row_pad_heads(W, in_pad_heads, c, pad)
    fin, width = W.shape
    rows = _round_up(fin + 1 + edge_dim, 8)
    pk = jnp.zeros((rows, width), jnp.float32)
    pk = pk.at[:fin, :].set(W)
    pk = pk.at[fin, :].set(B[0])
    pk = pk.at[fin + 1:fin + 1 + edge_dim, :heads * pad].set(WE)
    return pk, fin


def densify_graph(edge_index, edge_attr, n):
    # PyG convention: edge_index[0] = source j, edge_index[1] = target i.
    # TODO(synk): duplicate (src,dst) edges would be summed by PyG's scatter; the
    # dense representation keeps only one edge per (dst, src) pair.
    # TODO(synk): store these O(N^2) tensors in bf16 once N grows (bandwidth win on
    # v5e/v6e); cast to f32 inside the kernel, keep the -1e30 additive mask.
    src, dst = edge_index[0], edge_index[1]
    edge_dim = edge_attr.shape[1]
    mask = jnp.zeros((n, n), jnp.float32).at[dst, src].set(1.0)
    neg_bias = (mask - 1.0) * 1e30                                   # 0 on edges, -1e30 off
    astk = jnp.zeros((edge_dim, n, n), jnp.float32).at[:, dst, src].set(edge_attr.T)
    return jnp.concatenate([neg_bias[None], astk], axis=0)           # [1+edge_dim, N, N]


def transform_forward(params, x, edge_index, edge_attr, *, embedding_size, heads):
    n = x.shape[0]
    edge_dim = edge_attr.shape[1]
    c = embedding_size
    pad = _round_up(c, 128)                      # per-head lane padding (vreg alignment)

    graph = densify_graph(edge_index, edge_attr, n)
    p1, fin1 = pack_layer_params(params['conv1'], heads, c, edge_dim, pad)
    p2, fin2 = pack_layer_params(params['conv2'], 1, c, edge_dim, pad, in_pad_heads=heads)
    p3, fin3 = pack_layer_params(params['conv3'], 1, c, edge_dim, pad, in_pad_heads=1)

    kernel = functools.partial(_transform_kernel, C=c, H1=heads, edge_dim=edge_dim,
                               fins=(fin1, fin2, fin3), pad=pad)
    vmem = pl.BlockSpec(memory_space=pltpu.MemorySpace.VMEM)
    # TODO(synk): for fleets of small graphs, add a leading grid axis (one graph per
    # step, dimension_semantics=("parallel",)) so launch/prologue cost amortizes and
    # v7x's second TensorCore takes half the grid.
    # TODO(synk): for large N, tile neg_bias/astk as (TM, N) blocks over the dst axis
    # ("parallel"); size for v7x's 64 MiB VMEM (12*N^2 bytes resident -> N~2k limit
    # ungridded) and raise vmem_limit_bytes via pltpu.CompilerParams.
    out_pad = pl.pallas_call(
        kernel,
        out_shape=jax.ShapeDtypeStruct((n, pad), jnp.float32),
        in_specs=[vmem] * 5,
        out_specs=vmem,
    )(x, graph, p1, p2, p3)
    return out_pad[:, :c]                        # drop lane padding outside the kernel


if __name__ == "__main__":
    NUM_NODE_FEATURES = 4
    EMBEDDING_SIZE = 32
    HEADS = 2
    N = 8

    key = jax.random.PRNGKey(0)
    k_x, k_e, k1, k2, k3 = jax.random.split(key, 5)

    x = jax.random.normal(k_x, (N, NUM_NODE_FEATURES), jnp.float32)
    # simple directed graph: i -> i+1 and i -> i+2 (mod N); every node has 2 in-edges
    src = jnp.array([i for i in range(N)] + [i for i in range(N)], jnp.int32)
    dst = jnp.array([(i + 1) % N for i in range(N)] +
                    [(i + 2) % N for i in range(N)], jnp.int32)
    edge_index = jnp.stack([src, dst])                       # [2, E]
    edge_attr = jax.random.normal(k_e, (edge_index.shape[1], 2), jnp.float32)

    params = dict(
        conv1=init_tconv_params(k1, NUM_NODE_FEATURES, HEADS, EMBEDDING_SIZE),
        conv2=init_tconv_params(k2, HEADS * EMBEDDING_SIZE, 1, EMBEDDING_SIZE),
        conv3=init_tconv_params(k3, EMBEDDING_SIZE, 1, EMBEDDING_SIZE),
    )

    fwd = jax.jit(functools.partial(transform_forward,
                                    embedding_size=EMBEDDING_SIZE, heads=HEADS))
    out = fwd(params, x, edge_index, edge_attr)
    out = jax.block_until_ready(out)
    assert out.shape == (N, EMBEDDING_SIZE), out.shape
    assert bool(jnp.all(jnp.isfinite(out)))
    print("KERNEL_OK")
</pallas_src>

<mosaic_0001>
module attributes {stable_mosaic.version = 11 : i64} {
  func.func @_transform_kernel(%arg0: memref<8x4xf32, #tpu.memory_space<vmem>>, %arg1: memref<3x8x8xf32, #tpu.memory_space<vmem>>, %arg2: memref<8x1024xf32, #tpu.memory_space<vmem>>, %arg3: memref<264x512xf32, #tpu.memory_space<vmem>>, %arg4: memref<136x512xf32, #tpu.memory_space<vmem>>, %arg5: memref<8x128xf32, #tpu.memory_space<vmem>>) attributes {dimension_semantics = [], scalar_prefetch = 0 : i64, scratch_operands = 0 : i64, tpu.core_type = #tpu.core_type<tc>} {
    %c0 = arith.constant 0 : index
    %c0_0 = arith.constant 0 : index
    %c0_1 = arith.constant 0 : index
    %0 = vector.load %arg1[%c0, %c0_0, %c0_1] : memref<3x8x8xf32, #tpu.memory_space<vmem>>, vector<3x8x8xf32>
    %1 = vector.extract_strided_slice %0 {offsets = [0, 0, 0], sizes = [1, 8, 8], strides = [1, 1, 1]} : vector<3x8x8xf32> to vector<1x8x8xf32>
    %2 = vector.shape_cast %1 : vector<1x8x8xf32> to vector<8x8xf32>
    %3 = vector.extract_strided_slice %0 {offsets = [1, 0, 0], sizes = [1, 8, 8], strides = [1, 1, 1]} : vector<3x8x8xf32> to vector<1x8x8xf32>
    %4 = vector.shape_cast %3 : vector<1x8x8xf32> to vector<8x8xf32>
    %5 = vector.extract_strided_slice %0 {offsets = [2, 0, 0], sizes = [1, 8, 8], strides = [1, 1, 1]} : vector<3x8x8xf32> to vector<1x8x8xf32>
    %6 = vector.shape_cast %5 : vector<1x8x8xf32> to vector<8x8xf32>
    %c0_2 = arith.constant 0 : index
    %c0_3 = arith.constant 0 : index
    %7 = vector.load %arg0[%c0_2, %c0_3] : memref<8x4xf32, #tpu.memory_space<vmem>>, vector<8x4xf32>
    %c0_4 = arith.constant 0 : index
    %c0_5 = arith.constant 0 : index
    %8 = vector.load %arg2[%c0_4, %c0_5] : memref<8x1024xf32, #tpu.memory_space<vmem>>, vector<4x1024xf32>
    %c4 = arith.constant 4 : index
    %c0_6 = arith.constant 0 : index
    %9 = vector.load %arg2[%c4, %c0_6] : memref<8x1024xf32, #tpu.memory_space<vmem>>, vector<1x1024xf32>
    %c5 = arith.constant 5 : index
    %c0_7 = arith.constant 0 : index
    %10 = vector.load %arg2[%c5, %c0_7] : memref<8x1024xf32, #tpu.memory_space<vmem>>, vector<2x256xf32>
    %cst = arith.constant dense<0.000000e+00> : vector<8x1024xf32>
    %11 = tpu.matmul %7, %8, %cst {dimension_numbers = #tpu.dot_dimension_numbers<[1], [0], [0], [1], [0, 0, 1, 1], [], []>} : vector<8x4xf32>, vector<4x1024xf32>, vector<8x1024xf32> -> vector<8x1024xf32>
    %12 = vector.broadcast %9 : vector<1x1024xf32> to vector<8x1024xf32>
    %13 = arith.addf %11, %12 : vector<8x1024xf32>
    %14 = vector.extract_strided_slice %13 {offsets = [0, 0], sizes = [8, 256], strides = [1, 1]} : vector<8x1024xf32> to vector<8x256xf32>
    %cst_8 = arith.constant 0.176776692 : f32
    %15 = vector.broadcast %cst_8 : f32 to vector<8x256xf32>
    %16 = arith.mulf %14, %15 : vector<8x256xf32>
    %17 = vector.extract_strided_slice %13 {offsets = [0, 256], sizes = [8, 256], strides = [1, 1]} : vector<8x1024xf32> to vector<8x256xf32>
    %18 = vector.extract_strided_slice %13 {offsets = [0, 512], sizes = [8, 256], strides = [1, 1]} : vector<8x1024xf32> to vector<8x256xf32>
    %19 = vector.extract_strided_slice %13 {offsets = [0, 768], sizes = [8, 256], strides = [1, 1]} : vector<8x1024xf32> to vector<8x256xf32>
    %20 = vector.extract_strided_slice %16 {offsets = [0, 0], sizes = [8, 128], strides = [1, 1]} : vector<8x256xf32> to vector<8x128xf32>
    %21 = vector.extract_strided_slice %17 {offsets = [0, 0], sizes = [8, 128], strides = [1, 1]} : vector<8x256xf32> to vector<8x128xf32>
    %22 = vector.extract_strided_slice %18 {offsets = [0, 0], sizes = [8, 128], strides = [1, 1]} : vector<8x256xf32> to vector<8x128xf32>
    %23 = vector.extract_strided_slice %10 {offsets = [0, 0], sizes = [2, 128], strides = [1, 1]} : vector<2x256xf32> to vector<2x128xf32>
    %cst_9 = arith.constant dense<0.000000e+00> : vector<8x8xf32>
    %24 = tpu.matmul %20, %21, %cst_9 {dimension_numbers = #tpu.dot_dimension_numbers<[1], [1], [0], [0], [0, 0, 1, 0], [], []>} : vector<8x128xf32>, vector<8x128xf32>, vector<8x8xf32> -> vector<8x8xf32>
    %cst_10 = arith.constant dense<0.000000e+00> : vector<8x2xf32>
    %25 = tpu.matmul %20, %23, %cst_10 {dimension_numbers = #tpu.dot_dimension_numbers<[1], [1], [0], [0], [0, 0, 1, 0], [], []>} : vector<8x128xf32>, vector<2x128xf32>, vector<8x2xf32> -> vector<8x2xf32>
    %26 = vector.extract_strided_slice %25 {offsets = [0, 0], sizes = [8, 1], strides = [1, 1]} : vector<8x2xf32> to vector<8x1xf32>
    %27 = vector.broadcast %26 : vector<8x1xf32> to vector<8x8xf32>
    %28 = arith.mulf %27, %4 : vector<8x8xf32>
    %29 = arith.addf %24, %28 : vector<8x8xf32>
    %30 = vector.extract_strided_slice %25 {offsets = [0, 1], sizes = [8, 1], strides = [1, 1]} : vector<8x2xf32> to vector<8x1xf32>
    %31 = vector.broadcast %30 : vector<8x1xf32> to vector<8x8xf32>
    %32 = arith.mulf %31, %6 : vector<8x8xf32>
    %33 = arith.addf %29, %32 : vector<8x8xf32>
    %34 = arith.addf %33, %2 : vector<8x8xf32>
    %cst_11 = arith.constant dense<0xFF800000> : vector<8xf32>
    %35 = vector.multi_reduction <maximumf>, %34, %cst_11 [1] : vector<8x8xf32> to vector<8xf32>
    %36 = vector.shape_cast %35 : vector<8xf32> to vector<8x1xf32>
    %cst_12 = arith.constant -1.000000e+20 : f32
    %37 = vector.broadcast %cst_12 : f32 to vector<8x1xf32>
    %38 = arith.maximumf %36, %37 : vector<8x1xf32>
    %39 = vector.broadcast %38 : vector<8x1xf32> to vector<8x8xf32>
    %40 = arith.subf %34, %39 : vector<8x8xf32>
    %41 = math.exp %40 : vector<8x8xf32>
    %cst_13 = arith.constant dense<0.000000e+00> : vector<8xf32>
    %42 = vector.multi_reduction <add>, %41, %cst_13 [1] : vector<8x8xf32> to vector<8xf32>
    %43 = vector.shape_cast %42 : vector<8xf32> to vector<8x1xf32>
    %cst_14 = arith.constant 0.000000e+00 : f32
    %44 = vector.broadcast %cst_14 : f32 to vector<8x1xf32>
    %45 = arith.cmpf ogt, %43, %44 : vector<8x1xf32>
    %cst_15 = arith.constant 1.000000e+00 : f32
    %46 = vector.broadcast %cst_15 : f32 to vector<8x1xf32>
    %47 = arith.select %45, %43, %46 : vector<8x1xi1>, vector<8x1xf32>
    %48 = tpu.reciprocal %47 : vector<8x1xf32> -> vector<8x1xf32>
    %49 = vector.broadcast %48 : vector<8x1xf32> to vector<8x8xf32>
    %50 = arith.mulf %41, %49 : vector<8x8xf32>
    %cst_16 = arith.constant dense<0.000000e+00> : vector<8x128xf32>
    %51 = tpu.matmul %50, %22, %cst_16 {dimension_numbers = #tpu.dot_dimension_numbers<[1], [0], [0], [1], [0, 0, 1, 1], [], []>} : vector<8x8xf32>, vector<8x128xf32>, vector<8x128xf32> -> vector<8x128xf32>
    %52 = arith.mulf %50, %4 : vector<8x8xf32>
    %cst_17 = arith.constant dense<0.000000e+00> : vector<8xf32>
    %53 = vector.multi_reduction <add>, %52, %cst_17 [1] : vector<8x8xf32> to vector<8xf32>
    %54 = vector.shape_cast %53 : vector<8xf32> to vector<8x1xf32>
    %55 = arith.mulf %50, %6 : vector<8x8xf32>
    %cst_18 = arith.constant dense<0.000000e+00> : vector<8xf32>
    %56 = vector.multi_reduction <add>, %55, %cst_18 [1] : vector<8x8xf32> to vector<8xf32>
    %57 = vector.shape_cast %56 : vector<8xf32> to vector<8x1xf32>
    %58 = tpu.concatenate %54, %57 in 1 : vector<8x1xf32>, vector<8x1xf32> -> vector<8x2xf32>
    %cst_19 = arith.constant dense<0.000000e+00> : vector<8x128xf32>
    %59 = tpu.matmul %58, %23, %cst_19 {dimension_numbers = #tpu.dot_dimension_numbers<[1], [0], [0], [1], [0, 0, 1, 1], [], []>} : vector<8x2xf32>, vector<2x128xf32>, vector<8x128xf32> -> vector<8x128xf32>
    %60 = arith.addf %51, %59 : vector<8x128xf32>
    %61 = vector.extract_strided_slice %19 {offsets = [0, 0], sizes = [8, 128], strides = [1, 1]} : vector<8x256xf32> to vector<8x128xf32>
    %62 = arith.addf %60, %61 : vector<8x128xf32>
    %63 = vector.extract_strided_slice %16 {offsets = [0, 128], sizes = [8, 128], strides = [1, 1]} : vector<8x256xf32> to vector<8x128xf32>
    %64 = vector.extract_strided_slice %17 {offsets = [0, 128], sizes = [8, 128], strides = [1, 1]} : vector<8x256xf32> to vector<8x128xf32>
    %65 = vector.extract_strided_slice %18 {offsets = [0, 128], sizes = [8, 128], strides = [1, 1]} : vector<8x256xf32> to vector<8x128xf32>
    %66 = vector.extract_strided_slice %10 {offsets = [0, 128], sizes = [2, 128], strides = [1, 1]} : vector<2x256xf32> to vector<2x128xf32>
    %cst_20 = arith.constant dense<0.000000e+00> : vector<8x8xf32>
    %67 = tpu.matmul %63, %64, %cst_20 {dimension_numbers = #tpu.dot_dimension_numbers<[1], [1], [0], [0], [0, 0, 1, 0], [], []>} : vector<8x128xf32>, vector<8x128xf32>, vector<8x8xf32> -> vector<8x8xf32>
    %cst_21 = arith.constant dense<0.000000e+00> : vector<8x2xf32>
    %68 = tpu.matmul %63, %66, %cst_21 {dimension_numbers = #tpu.dot_dimension_numbers<[1], [1], [0], [0], [0, 0, 1, 0], [], []>} : vector<8x128xf32>, vector<2x128xf32>, vector<8x2xf32> -> vector<8x2xf32>
    %69 = vector.extract_strided_slice %68 {offsets = [0, 0], sizes = [8, 1], strides = [1, 1]} : vector<8x2xf32> to vector<8x1xf32>
    %70 = vector.broadcast %69 : vector<8x1xf32> to vector<8x8xf32>
    %71 = arith.mulf %70, %4 : vector<8x8xf32>
    %72 = arith.addf %67, %71 : vector<8x8xf32>
    %73 = vector.extract_strided_slice %68 {offsets = [0, 1], sizes = [8, 1], strides = [1, 1]} : vector<8x2xf32> to vector<8x1xf32>
    %74 = vector.broadcast %73 : vector<8x1xf32> to vector<8x8xf32>
    %75 = arith.mulf %74, %6 : vector<8x8xf32>
    %76 = arith.addf %72, %75 : vector<8x8xf32>
    %77 = arith.addf %76, %2 : vector<8x8xf32>
    %cst_22 = arith.constant dense<0xFF800000> : vector<8xf32>
    %78 = vector.multi_reduction <maximumf>, %77, %cst_22 [1] : vector<8x8xf32> to vector<8xf32>
    %79 = vector.shape_cast %78 : vector<8xf32> to vector<8x1xf32>
    %cst_23 = arith.constant -1.000000e+20 : f32
    %80 = vector.broadcast %cst_23 : f32 to vector<8x1xf32>
    %81 = arith.maximumf %79, %80 : vector<8x1xf32>
    %82 = vector.broadcast %81 : vector<8x1xf32> to vector<8x8xf32>
    %83 = arith.subf %77, %82 : vector<8x8xf32>
    %84 = math.exp %83 : vector<8x8xf32>
    %cst_24 = arith.constant dense<0.000000e+00> : vector<8xf32>
    %85 = vector.multi_reduction <add>, %84, %cst_24 [1] : vector<8x8xf32> to vector<8xf32>
    %86 = vector.shape_cast %85 : vector<8xf32> to vector<8x1xf32>
    %cst_25 = arith.constant 0.000000e+00 : f32
    %87 = vector.broadcast %cst_25 : f32 to vector<8x1xf32>
    %88 = arith.cmpf ogt, %86, %87 : vector<8x1xf32>
    %cst_26 = arith.constant 1.000000e+00 : f32
    %89 = vector.broadcast %cst_26 : f32 to vector<8x1xf32>
    %90 = arith.select %88, %86, %89 : vector<8x1xi1>, vector<8x1xf32>
    %91 = tpu.reciprocal %90 : vector<8x1xf32> -> vector<8x1xf32>
    %92 = vector.broadcast %91 : vector<8x1xf32> to vector<8x8xf32>
    %93 = arith.mulf %84, %92 : vector<8x8xf32>
    %cst_27 = arith.constant dense<0.000000e+00> : vector<8x128xf32>
    %94 = tpu.matmul %93, %65, %cst_27 {dimension_numbers = #tpu.dot_dimension_numbers<[1], [0], [0], [1], [0, 0, 1, 1], [], []>} : vector<8x8xf32>, vector<8x128xf32>, vector<8x128xf32> -> vector<8x128xf32>
    %95 = arith.mulf %93, %4 : vector<8x8xf32>
    %cst_28 = arith.constant dense<0.000000e+00> : vector<8xf32>
    %96 = vector.multi_reduction <add>, %95, %cst_28 [1] : vector<8x8xf32> to vector<8xf32>
    %97 = vector.shape_cast %96 : vector<8xf32> to vector<8x1xf32>
    %98 = arith.mulf %93, %6 : vector<8x8xf32>
    %cst_29 = arith.constant dense<0.000000e+00> : vector<8xf32>
    %99 = vector.multi_reduction <add>, %98, %cst_29 [1] : vector<8x8xf32> to vector<8xf32>
    %100 = vector.shape_cast %99 : vector<8xf32> to vector<8x1xf32>
    %101 = tpu.concatenate %97, %100 in 1 : vector<8x1xf32>, vector<8x1xf32> -> vector<8x2xf32>
    %cst_30 = arith.constant dense<0.000000e+00> : vector<8x128xf32>
    %102 = tpu.matmul %101, %66, %cst_30 {dimension_numbers = #tpu.dot_dimension_numbers<[1], [0], [0], [1], [0, 0, 1, 1], [], []>} : vector<8x2xf32>, vector<2x128xf32>, vector<8x128xf32> -> vector<8x128xf32>
    %103 = arith.addf %94, %102 : vector<8x128xf32>
    %104 = vector.extract_strided_slice %19 {offsets = [0, 128], sizes = [8, 128], strides = [1, 1]} : vector<8x256xf32> to vector<8x128xf32>
    %105 = arith.addf %103, %104 : vector<8x128xf32>
    %106 = tpu.concatenate %62, %105 in 1 : vector<8x128xf32>, vector<8x128xf32> -> vector<8x256xf32>
    %cst_31 = arith.constant 0.000000e+00 : f32
    %107 = vector.broadcast %cst_31 : f32 to vector<8x256xf32>
    %108 = arith.cmpf oge, %106, %107 : vector<8x256xf32>
    %cst_32 = arith.constant 0.00999999977 : f32
    %109 = vector.broadcast %cst_32 : f32 to vector<8x256xf32>
    %110 = arith.mulf %109, %106 : vector<8x256xf32>
    %111 = arith.select %108, %106, %110 : vector<8x256xi1>, vector<8x256xf32>
    %c0_33 = arith.constant 0 : index
    %c0_34 = arith.constant 0 : index
    %112 = vector.load %arg3[%c0_33, %c0_34] : memref<264x512xf32, #tpu.memory_space<vmem>>, vector<256x512xf32>
    %c256 = arith.constant 256 : index
    %c0_35 = arith.constant 0 : index
    %113 = vector.load %arg3[%c256, %c0_35] : memref<264x512xf32, #tpu.memory_space<vmem>>, vector<1x512xf32>
    %c257 = arith.constant 257 : index
    %c0_36 = arith.constant 0 : index
    %114 = vector.load %arg3[%c257, %c0_36] : memref<264x512xf32, #tpu.memory_space<vmem>>, vector<2x128xf32>
    %cst_37 = arith.constant dense<0.000000e+00> : vector<8x512xf32>
    %115 = tpu.matmul %111, %112, %cst_37 {dimension_numbers = #tpu.dot_dimension_numbers<[1], [0], [0], [1], [0, 0, 1, 1], [], []>} : vector<8x256xf32>, vector<256x512xf32>, vector<8x512xf32> -> vector<8x512xf32>
    %116 = vector.broadcast %113 : vector<1x512xf32> to vector<8x512xf32>
    %117 = arith.addf %115, %116 : vector<8x512xf32>
    %118 = vector.extract_strided_slice %117 {offsets = [0, 0], sizes = [8, 128], strides = [1, 1]} : vector<8x512xf32> to vector<8x128xf32>
    %cst_38 = arith.constant 0.176776692 : f32
    %119 = vector.broadcast %cst_38 : f32 to vector<8x128xf32>
    %120 = arith.mulf %118, %119 : vector<8x128xf32>
    %121 = vector.extract_strided_slice %117 {offsets = [0, 128], sizes = [8, 128], strides = [1, 1]} : vector<8x512xf32> to vector<8x128xf32>
    %122 = vector.extract_strided_slice %117 {offsets = [0, 256], sizes = [8, 128], strides = [1, 1]} : vector<8x512xf32> to vector<8x128xf32>
    %123 = vector.extract_strided_slice %117 {offsets = [0, 384], sizes = [8, 128], strides = [1, 1]} : vector<8x512xf32> to vector<8x128xf32>
    %cst_39 = arith.constant dense<0.000000e+00> : vector<8x8xf32>
    %124 = tpu.matmul %120, %121, %cst_39 {dimension_numbers = #tpu.dot_dimension_numbers<[1], [1], [0], [0], [0, 0, 1, 0], [], []>} : vector<8x128xf32>, vector<8x128xf32>, vector<8x8xf32> -> vector<8x8xf32>
    %cst_40 = arith.constant dense<0.000000e+00> : vector<8x2xf32>
    %125 = tpu.matmul %120, %114, %cst_40 {dimension_numbers = #tpu.dot_dimension_numbers<[1], [1], [0], [0], [0, 0, 1, 0], [], []>} : vector<8x128xf32>, vector<2x128xf32>, vector<8x2xf32> -> vector<8x2xf32>
    %126 = vector.extract_strided_slice %125 {offsets = [0, 0], sizes = [8, 1], strides = [1, 1]} : vector<8x2xf32> to vector<8x1xf32>
    %127 = vector.broadcast %126 : vector<8x1xf32> to vector<8x8xf32>
    %128 = arith.mulf %127, %4 : vector<8x8xf32>
    %129 = arith.addf %124, %128 : vector<8x8xf32>
    %130 = vector.extract_strided_slice %125 {offsets = [0, 1], sizes = [8, 1], strides = [1, 1]} : vector<8x2xf32> to vector<8x1xf32>
    %131 = vector.broadcast %130 : vector<8x1xf32> to vector<8x8xf32>
    %132 = arith.mulf %131, %6 : vector<8x8xf32>
    %133 = arith.addf %129, %132 : vector<8x8xf32>
    %134 = arith.addf %133, %2 : vector<8x8xf32>
    %cst_41 = arith.constant dense<0xFF800000> : vector<8xf32>
    %135 = vector.multi_reduction <maximumf>, %134, %cst_41 [1] : vector<8x8xf32> to vector<8xf32>
    %136 = vector.shape_cast %135 : vector<8xf32> to vector<8x1xf32>
    %cst_42 = arith.constant -1.000000e+20 : f32
    %137 = vector.broadcast %cst_42 : f32 to vector<8x1xf32>
    %138 = arith.maximumf %136, %137 : vector<8x1xf32>
    %139 = vector.broadcast %138 : vector<8x1xf32> to vector<8x8xf32>
    %140 = arith.subf %134, %139 : vector<8x8xf32>
    %141 = math.exp %140 : vector<8x8xf32>
    %cst_43 = arith.constant dense<0.000000e+00> : vector<8xf32>
    %142 = vector.multi_reduction <add>, %141, %cst_43 [1] : vector<8x8xf32> to vector<8xf32>
    %143 = vector.shape_cast %142 : vector<8xf32> to vector<8x1xf32>
    %cst_44 = arith.constant 0.000000e+00 : f32
    %144 = vector.broadcast %cst_44 : f32 to vector<8x1xf32>
    %145 = arith.cmpf ogt, %143, %144 : vector<8x1xf32>
    %cst_45 = arith.constant 1.000000e+00 : f32
    %146 = vector.broadcast %cst_45 : f32 to vector<8x1xf32>
    %147 = arith.select %145, %143, %146 : vector<8x1xi1>, vector<8x1xf32>
    %148 = tpu.reciprocal %147 : vector<8x1xf32> -> vector<8x1xf32>
    %149 = vector.broadcast %148 : vector<8x1xf32> to vector<8x8xf32>
    %150 = arith.mulf %141, %149 : vector<8x8xf32>
    %cst_46 = arith.constant dense<0.000000e+00> : vector<8x128xf32>
    %151 = tpu.matmul %150, %122, %cst_46 {dimension_numbers = #tpu.dot_dimension_numbers<[1], [0], [0], [1], [0, 0, 1, 1], [], []>} : vector<8x8xf32>, vector<8x128xf32>, vector<8x128xf32> -> vector<8x128xf32>
    %152 = arith.mulf %150, %4 : vector<8x8xf32>
    %cst_47 = arith.constant dense<0.000000e+00> : vector<8xf32>
    %153 = vector.multi_reduction <add>, %152, %cst_47 [1] : vector<8x8xf32> to vector<8xf32>
    %154 = vector.shape_cast %153 : vector<8xf32> to vector<8x1xf32>
    %155 = arith.mulf %150, %6 : vector<8x8xf32>
    %cst_48 = arith.constant dense<0.000000e+00> : vector<8xf32>
    %156 = vector.multi_reduction <add>, %155, %cst_48 [1] : vector<8x8xf32> to vector<8xf32>
    %157 = vector.shape_cast %156 : vector<8xf32> to vector<8x1xf32>
    %158 = tpu.concatenate %154, %157 in 1 : vector<8x1xf32>, vector<8x1xf32> -> vector<8x2xf32>
    %cst_49 = arith.constant dense<0.000000e+00> : vector<8x128xf32>
    %159 = tpu.matmul %158, %114, %cst_49 {dimension_numbers = #tpu.dot_dimension_numbers<[1], [0], [0], [1], [0, 0, 1, 1], [], []>} : vector<8x2xf32>, vector<2x128xf32>, vector<8x128xf32> -> vector<8x128xf32>
    %160 = arith.addf %151, %159 : vector<8x128xf32>
    %161 = arith.addf %160, %123 : vector<8x128xf32>
    %cst_50 = arith.constant 0.000000e+00 : f32
    %162 = vector.broadcast %cst_50 : f32 to vector<8x128xf32>
    %163 = arith.cmpf oge, %161, %162 : vector<8x128xf32>
    %cst_51 = arith.constant 0.00999999977 : f32
    %164 = vector.broadcast %cst_51 : f32 to vector<8x128xf32>
    %165 = arith.mulf %164, %161 : vector<8x128xf32>
    %166 = arith.select %163, %161, %165 : vector<8x128xi1>, vector<8x128xf32>
    %c0_52 = arith.constant 0 : index
    %c0_53 = arith.constant 0 : index
    %167 = vector.load %arg4[%c0_52, %c0_53] : memref<136x512xf32, #tpu.memory_space<vmem>>, vector<128x512xf32>
    %c128 = arith.constant 128 : index
    %c0_54 = arith.constant 0 : index
    %168 = vector.load %arg4[%c128, %c0_54] : memref<136x512xf32, #tpu.memory_space<vmem>>, vector<1x512xf32>
    %c129 = arith.constant 129 : index
    %c0_55 = arith.constant 0 : index
    %169 = vector.load %arg4[%c129, %c0_55] : memref<136x512xf32, #tpu.memory_space<vmem>>, vector<2x128xf32>
    %cst_56 = arith.constant dense<0.000000e+00> : vector<8x512xf32>
    %170 = tpu.matmul %166, %167, %cst_56 {dimension_numbers = #tpu.dot_dimension_numbers<[1], [0], [0], [1], [0, 0, 1, 1], [], []>} : vector<8x128xf32>, vector<128x512xf32>, vector<8x512xf32> -> vector<8x512xf32>
    %171 = vector.broadcast %168 : vector<1x512xf32> to vector<8x512xf32>
    %172 = arith.addf %170, %171 : vector<8x512xf32>
    %173 = vector.extract_strided_slice %172 {offsets = [0, 0], sizes = [8, 128], strides = [1, 1]} : vector<8x512xf32> to vector<8x128xf32>
    %cst_57 = arith.constant 0.176776692 : f32
    %174 = vector.broadcast %cst_57 : f32 to vector<8x128xf32>
    %175 = arith.mulf %173, %174 : vector<8x128xf32>
    %176 = vector.extract_strided_slice %172 {offsets = [0, 128], sizes = [8, 128], strides = [1, 1]} : vector<8x512xf32> to vector<8x128xf32>
    %177 = vector.extract_strided_slice %172 {offsets = [0, 256], sizes = [8, 128], strides = [1, 1]} : vector<8x512xf32> to vector<8x128xf32>
    %178 = vector.extract_strided_slice %172 {offsets = [0, 384], sizes = [8, 128], strides = [1, 1]} : vector<8x512xf32> to vector<8x128xf32>
    %cst_58 = arith.constant dense<0.000000e+00> : vector<8x8xf32>
    %179 = tpu.matmul %175, %176, %cst_58 {dimension_numbers = #tpu.dot_dimension_numbers<[1], [1], [0], [0], [0, 0, 1, 0], [], []>} : vector<8x128xf32>, vector<8x128xf32>, vector<8x8xf32> -> vector<8x8xf32>
    %cst_59 = arith.constant dense<0.000000e+00> : vector<8x2xf32>
    %180 = tpu.matmul %175, %169, %cst_59 {dimension_numbers = #tpu.dot_dimension_numbers<[1], [1], [0], [0], [0, 0, 1, 0], [], []>} : vector<8x128xf32>, vector<2x128xf32>, vector<8x2xf32> -> vector<8x2xf32>
    %181 = vector.extract_strided_slice %180 {offsets = [0, 0], sizes = [8, 1], strides = [1, 1]} : vector<8x2xf32> to vector<8x1xf32>
    %182 = vector.broadcast %181 : vector<8x1xf32> to vector<8x8xf32>
    %183 = arith.mulf %182, %4 : vector<8x8xf32>
    %184 = arith.addf %179, %183 : vector<8x8xf32>
    %185 = vector.extract_strided_slice %180 {offsets = [0, 1], sizes = [8, 1], strides = [1, 1]} : vector<8x2xf32> to vector<8x1xf32>
    %186 = vector.broadcast %185 : vector<8x1xf32> to vector<8x8xf32>
    %187 = arith.mulf %186, %6 : vector<8x8xf32>
    %188 = arith.addf %184, %187 : vector<8x8xf32>
    %189 = arith.addf %188, %2 : vector<8x8xf32>
    %cst_60 = arith.constant dense<0xFF800000> : vector<8xf32>
    %190 = vector.multi_reduction <maximumf>, %189, %cst_60 [1] : vector<8x8xf32> to vector<8xf32>
    %191 = vector.shape_cast %190 : vector<8xf32> to vector<8x1xf32>
    %cst_61 = arith.constant -1.000000e+20 : f32
    %192 = vector.broadcast %cst_61 : f32 to vector<8x1xf32>
    %193 = arith.maximumf %191, %192 : vector<8x1xf32>
    %194 = vector.broadcast %193 : vector<8x1xf32> to vector<8x8xf32>
    %195 = arith.subf %189, %194 : vector<8x8xf32>
    %196 = math.exp %195 : vector<8x8xf32>
    %cst_62 = arith.constant dense<0.000000e+00> : vector<8xf32>
    %197 = vector.multi_reduction <add>, %196, %cst_62 [1] : vector<8x8xf32> to vector<8xf32>
    %198 = vector.shape_cast %197 : vector<8xf32> to vector<8x1xf32>
    %cst_63 = arith.constant 0.000000e+00 : f32
    %199 = vector.broadcast %cst_63 : f32 to vector<8x1xf32>
    %200 = arith.cmpf ogt, %198, %199 : vector<8x1xf32>
    %cst_64 = arith.constant 1.000000e+00 : f32
    %201 = vector.broadcast %cst_64 : f32 to vector<8x1xf32>
    %202 = arith.select %200, %198, %201 : vector<8x1xi1>, vector<8x1xf32>
    %203 = tpu.reciprocal %202 : vector<8x1xf32> -> vector<8x1xf32>
    %204 = vector.broadcast %203 : vector<8x1xf32> to vector<8x8xf32>
    %205 = arith.mulf %196, %204 : vector<8x8xf32>
    %cst_65 = arith.constant dense<0.000000e+00> : vector<8x128xf32>
    %206 = tpu.matmul %205, %177, %cst_65 {dimension_numbers = #tpu.dot_dimension_numbers<[1], [0], [0], [1], [0, 0, 1, 1], [], []>} : vector<8x8xf32>, vector<8x128xf32>, vector<8x128xf32> -> vector<8x128xf32>
    %207 = arith.mulf %205, %4 : vector<8x8xf32>
    %cst_66 = arith.constant dense<0.000000e+00> : vector<8xf32>
    %208 = vector.multi_reduction <add>, %207, %cst_66 [1] : vector<8x8xf32> to vector<8xf32>
    %209 = vector.shape_cast %208 : vector<8xf32> to vector<8x1xf32>
    %210 = arith.mulf %205, %6 : vector<8x8xf32>
    %cst_67 = arith.constant dense<0.000000e+00> : vector<8xf32>
    %211 = vector.multi_reduction <add>, %210, %cst_67 [1] : vector<8x8xf32> to vector<8xf32>
    %212 = vector.shape_cast %211 : vector<8xf32> to vector<8x1xf32>
    %213 = tpu.concatenate %209, %212 in 1 : vector<8x1xf32>, vector<8x1xf32> -> vector<8x2xf32>
    %cst_68 = arith.constant dense<0.000000e+00> : vector<8x128xf32>
    %214 = tpu.matmul %213, %169, %cst_68 {dimension_numbers = #tpu.dot_dimension_numbers<[1], [0], [0], [1], [0, 0, 1, 1], [], []>} : vector<8x2xf32>, vector<2x128xf32>, vector<8x128xf32> -> vector<8x128xf32>
    %215 = arith.addf %206, %214 : vector<8x128xf32>
    %216 = arith.addf %215, %178 : vector<8x128xf32>
    %c0_69 = arith.constant 0 : index
    %c0_70 = arith.constant 0 : index
    %217 = vector.load %arg5[%c0_69, %c0_70] : memref<8x128xf32, #tpu.memory_space<vmem>>, vector<8x128xf32>
    tpu.vector_store %arg5[%c0_69, %c0_70], %216 {strides = array<i32>} : memref<8x128xf32, #tpu.memory_space<vmem>>, vector<8x128xf32>,
    return
  }
}

</mosaic_0001>

<llo_original>
// kernel: transform_forward.1
$region0: #{transform_forward.1}
  #allocation0 [shape = 'u32[]', space=smem, size = 0x4, offset = 0x4, fixed_abs, tag = 'smem constant byte address 0x4 - core index']
  #allocation1 [shape = 'u32[72,128]{1,0:T(1,128)}', space=vmem, size = 0x9000, scoped, tag = 'internal scratch']
  %s0 = inlined_call_operand.vmem [shape: f32[8,4], index: 0, kind: input, shape index: {}]
  %s1 = inlined_call_operand.vmem [shape: f32[3,8,8], index: 1, kind: input, shape index: {}]
  %s2 = inlined_call_operand.vmem [shape: f32[8,1024], index: 2, kind: input, shape index: {}]
  %s3 = inlined_call_operand.vmem [shape: f32[264,512], index: 3, kind: input, shape index: {}]
  %s4 = inlined_call_operand.vmem [shape: f32[136,512], index: 4, kind: input, shape index: {}]
  %s5 = inlined_call_operand.hbm [shape: f32[8,128], index: 5, kind: output, shape index: {}]
  %s6 = sld [smem:[#allocation0]]
  $region30: #{transform_forward.1} parent=0
    _
  %s8 = ssub.s32 1, %s6
  %s9 = scalar_select 0, %s8, %s6
  $region1: #{transform_forward.1} parent=0
    #allocation2 [shape = 'u8[4096]{0}', space=vmem, size = 0x1000, scoped, tag = 'output window, operand 0, single buffered']
    #allocation3 [shape = 's32[1]{0}', space=sflag, size = 0x4, scoped, tag = 'scoped memory for transform_forward.1']
    %10 = vsyncpa [#allocation3], 0
    // Predicated region
    $region2: #{transform_forward.1} parent=1 // pred_check
      _
    $region3: #{transform_forward.1} parent=1 // pred_check_branch
      %12 = sbr.rel (0) target = $region5
    $region4: #{transform_forward.1} parent=1 // pred_region
      _
    $region5: #{transform_forward.1} parent=1 // pred_fallthru
      _
    // Predicated region
    $region6: #{transform_forward.1} parent=1 // pred_check
      _
    $region7: #{transform_forward.1} parent=1 // pred_check_branch
      %14 = sbr.rel (0) target = $region9
    $region8: #{transform_forward.1} parent=1 // pred_region
      _
    $region9: #{transform_forward.1} parent=1 // pred_fallthru
      _
    // Predicated region
    $region10: #{transform_forward.1} parent=1 // pred_check
      _
    $region11: #{transform_forward.1} parent=1 // pred_check_branch
      %16 = sbr.rel (0) target = $region13
    $region12: #{transform_forward.1} parent=1 // pred_region
      _
    $region13: #{transform_forward.1} parent=1 // pred_fallthru
      _
    // Predicated region
    $region14: #{transform_forward.1} parent=1 // pred_check
      _
    $region15: #{transform_forward.1} parent=1 // pred_check_branch
      %18 = sbr.rel (0) target = $region17
    $region16: #{transform_forward.1} parent=1 // pred_region
      _
    $region17: #{transform_forward.1} parent=1 // pred_fallthru
      _
    // Predicated region
    $region18: #{transform_forward.1} parent=1 // pred_check
      _
    $region19: #{transform_forward.1} parent=1 // pred_check_branch
      %20 = sbr.rel (0) target = $region21
    $region20: #{transform_forward.1} parent=1 // pred_region
      _
    $region21: #{transform_forward.1} parent=1 // pred_fallthru
      _
    %v21 = vld [vmem:[%s1] sm:$0xff]
    %v22 = vld [vmem:[%s1 + $0x8] sm:$0xff]
    %v23 = vld [vmem:[%s1 + $0x10] sm:$0xff]
    %v24 = vld [vmem:[%s0] sm:$0xff]
    %v25 = vld [vmem:[%s2] sm:$0xf]
    %v26 = vld [vmem:[%s2 + $0x8] sm:$0xf]
    %v27 = vld [vmem:[%s2 + $0x10] sm:$0xf]
    %v28 = vld [vmem:[%s2 + $0x18] sm:$0xf]
    %v29 = vld [vmem:[%s2 + $0x20] sm:$0xf]
    %v30 = vld [vmem:[%s2 + $0x28] sm:$0xf]
    %v31 = vld [vmem:[%s2 + $0x30] sm:$0xf]
    %v32 = vld [vmem:[%s2 + $0x38] sm:$0xf]
    %s33 = scalar_lea.vmem %s2, 4
    %v34 = vld [vmem:[%s33] ss:$8 sm:$0xf]
    %v35 = vld [vmem:[%s33] ss:$8 sm:$0xf0]
    %v36 = vor.u32 %v34, %v35
    %v37 = vld [vmem:[%s2] sm:$0x60]
    %v38 = vld [vmem:[%s2 + $0x8] sm:$0x60]
    %v40 = vperm.slane %v36, 0
    %v41 = vperm.slane %v36, 1
    %v42 = vperm.slane %v36, 2
    %v43 = vperm.slane %v36, 3
    %v44 = vperm.slane %v36, 4
    %v45 = vperm.slane %v36, 5
    %v46 = vperm.slane %v36, 6
    %v47 = vperm.slane %v36, 7
    %vm56 = vcmask 31744
    %v58 = vsel %vm56, %v24, 0
    %vm60 = vcmask 1043456
    %v62 = vsel %vm60, %v25, 0
    %v65 = vsel %vm60, %v26, 0
    %v68 = vsel %vm60, %v27, 0
    %v71 = vsel %vm60, %v28, 0
    %v74 = vsel %vm60, %v29, 0
    %v77 = vsel %vm60, %v30, 0
    %v80 = vsel %vm60, %v31, 0
    %v83 = vsel %vm60, %v32, 0
    %85 = vmatpush.msra.mxu0 0.0
    %86 = vmatpush.msra.mxu0 0.0
    %87 = vmatpush.msra.mxu0 0.0
    %88 = vmatpush.msra.mxu0 0.0
    %89 = vmatpush.msra.mxu0 0.0
    %90 = vmatpush.msra.mxu0 0.0
    %91 = vmatpush.msra.mxu0 0.0
    %92 = vmatpush.msra.mxu0 0.0
    %93 = vmatpush.msra.mxu0 0.0
    %94 = vmatpush.msra.mxu0 0.0
    %95 = vmatpush.msra.mxu0 0.0
    %96 = vmatpush.msra.mxu0 0.0
    %97 = vmatpush.msra.mxu0 0.0
    %98 = vmatpush.msra.mxu0 0.0
    %99 = vmatpush.msra.mxu0 0.0
    %100 = vmatpush.msra.mxu0 %v62
    %101 = vmatmul.f32.gmra.mxu0 %v58
    %v102 = vpop.f32.mrf.mxu0
    %v103 = vadd.f32 %v40, %v102
    %104 = vdwg.mxu0
    %105 = vmatpush.msra.mxu0 0.0
    %106 = vmatpush.msra.mxu0 0.0
    %107 = vmatpush.msra.mxu0 0.0
    %108 = vmatpush.msra.mxu0 0.0
    %109 = vmatpush.msra.mxu0 0.0
    %110 = vmatpush.msra.mxu0 0.0
    %111 = vmatpush.msra.mxu0 0.0
    %112 = vmatpush.msra.mxu0 0.0
    %113 = vmatpush.msra.mxu0 0.0
    %114 = vmatpush.msra.mxu0 0.0
    %115 = vmatpush.msra.mxu0 0.0
    %116 = vmatpush.msra.mxu0 0.0
    %117 = vmatpush.msra.mxu0 0.0
    %118 = vmatpush.msra.mxu0 0.0
    %119 = vmatpush.msra.mxu0 0.0
    %120 = vmatpush.msra.mxu0 %v65
    %121 = vmatmul.f32.gmra.mxu0 %v58
    %v122 = vpop.f32.mrf.mxu0
    %v123 = vadd.f32 %v41, %v122
    %124 = vdwg.mxu0
    %125 = vmatpush.msra.mxu0 0.0
    %126 = vmatpush.msra.mxu0 0.0
    %127 = vmatpush.msra.mxu0 0.0
    %128 = vmatpush.msra.mxu0 0.0
    %129 = vmatpush.msra.mxu0 0.0
    %130 = vmatpush.msra.mxu0 0.0
    %131 = vmatpush.msra.mxu0 0.0
    %132 = vmatpush.msra.mxu0 0.0
    %133 = vmatpush.msra.mxu0 0.0
    %134 = vmatpush.msra.mxu0 0.0
    %135 = vmatpush.msra.mxu0 0.0
    %136 = vmatpush.msra.mxu0 0.0
    %137 = vmatpush.msra.mxu0 0.0
    %138 = vmatpush.msra.mxu0 0.0
    %139 = vmatpush.msra.mxu0 0.0
    %140 = vmatpush.msra.mxu0 %v68
    %141 = vmatmul.f32.gmra.mxu0 %v58
    %v142 = vpop.f32.mrf.mxu0
    %v143 = vadd.f32 %v42, %v142
    %144 = vdwg.mxu0
    %145 = vmatpush.msra.mxu0 0.0
    %146 = vmatpush.msra.mxu0 0.0
    %147 = vmatpush.msra.mxu0 0.0
    %148 = vmatpush.msra.mxu0 0.0
    %149 = vmatpush.msra.mxu0 0.0
    %150 = vmatpush.msra.mxu0 0.0
    %151 = vmatpush.msra.mxu0 0.0
    %152 = vmatpush.msra.mxu0 0.0
    %153 = vmatpush.msra.mxu0 0.0
    %154 = vmatpush.msra.mxu0 0.0
    %155 = vmatpush.msra.mxu0 0.0
    %156 = vmatpush.msra.mxu0 0.0
    %157 = vmatpush.msra.mxu0 0.0
    %158 = vmatpush.msra.mxu0 0.0
    %159 = vmatpush.msra.mxu0 0.0
    %160 = vmatpush.msra.mxu0 %v71
    %161 = vmatmul.f32.gmra.mxu0 %v58
    %v162 = vpop.f32.mrf.mxu0
    %v163 = vadd.f32 %v43, %v162
    %164 = vdwg.mxu0
    %165 = vmatpush.msra.mxu0 0.0
    %166 = vmatpush.msra.mxu0 0.0
    %167 = vmatpush.msra.mxu0 0.0
    %168 = vmatpush.msra.mxu0 0.0
    %169 = vmatpush.msra.mxu0 0.0
    %170 = vmatpush.msra.mxu0 0.0
    %171 = vmatpush.msra.mxu0 0.0
    %172 = vmatpush.msra.mxu0 0.0
    %173 = vmatpush.msra.mxu0 0.0
    %174 = vmatpush.msra.mxu0 0.0
    %175 = vmatpush.msra.mxu0 0.0
    %176 = vmatpush.msra.mxu0 0.0
    %177 = vmatpush.msra.mxu0 0.0
    %178 = vmatpush.msra.mxu0 0.0
    %179 = vmatpush.msra.mxu0 0.0
    %180 = vmatpush.msra.mxu0 %v74
    %181 = vmatmul.f32.gmra.mxu0 %v58
    %v182 = vpop.f32.mrf.mxu0
    %v183 = vadd.f32 %v44, %v182
    %184 = vdwg.mxu0
    %185 = vmatpush.msra.mxu0 0.0
    %186 = vmatpush.msra.mxu0 0.0
    %187 = vmatpush.msra.mxu0 0.0
    %188 = vmatpush.msra.mxu0 0.0
    %189 = vmatpush.msra.mxu0 0.0
    %190 = vmatpush.msra.mxu0 0.0
    %191 = vmatpush.msra.mxu0 0.0
    %192 = vmatpush.msra.mxu0 0.0
    %193 = vmatpush.msra.mxu0 0.0
    %194 = vmatpush.msra.mxu0 0.0
    %195 = vmatpush.msra.mxu0 0.0
    %196 = vmatpush.msra.mxu0 0.0
    %197 = vmatpush.msra.mxu0 0.0
    %198 = vmatpush.msra.mxu0 0.0
    %199 = vmatpush.msra.mxu0 0.0
    %200 = vmatpush.msra.mxu0 %v77
    %201 = vmatmul.f32.gmra.mxu0 %v58
    %v202 = vpop.f32.mrf.mxu0
    %v203 = vadd.f32 %v45, %v202
    %204 = vdwg.mxu0
    %205 = vmatpush.msra.mxu0 0.0
    %206 = vmatpush.msra.mxu0 0.0
    %207 = vmatpush.msra.mxu0 0.0
    %208 = vmatpush.msra.mxu0 0.0
    %209 = vmatpush.msra.mxu0 0.0
    %210 = vmatpush.msra.mxu0 0.0
    %211 = vmatpush.msra.mxu0 0.0
    %212 = vmatpush.msra.mxu0 0.0
    %213 = vmatpush.msra.mxu0 0.0
    %214 = vmatpush.msra.mxu0 0.0
    %215 = vmatpush.msra.mxu0 0.0
    %216 = vmatpush.msra.mxu0 0.0
    %217 = vmatpush.msra.mxu0 0.0
    %218 = vmatpush.msra.mxu0 0.0
    %219 = vmatpush.msra.mxu0 0.0
    %220 = vmatpush.msra.mxu0 %v80
    %221 = vmatmul.f32.gmra.mxu0 %v58
    %v222 = vpop.f32.mrf.mxu0
    %v223 = vadd.f32 %v46, %v222
    %224 = vdwg.mxu0
    %225 = vmatpush.msra.mxu0 0.0
    %226 = vmatpush.msra.mxu0 0.0
    %227 = vmatpush.msra.mxu0 0.0
    %228 = vmatpush.msra.mxu0 0.0
    %229 = vmatpush.msra.mxu0 0.0
    %230 = vmatpush.msra.mxu0 0.0
    %231 = vmatpush.msra.mxu0 0.0
    %232 = vmatpush.msra.mxu0 0.0
    %233 = vmatpush.msra.mxu0 0.0
    %234 = vmatpush.msra.mxu0 0.0
    %235 = vmatpush.msra.mxu0 0.0
    %236 = vmatpush.msra.mxu0 0.0
    %237 = vmatpush.msra.mxu0 0.0
    %238 = vmatpush.msra.mxu0 0.0
    %239 = vmatpush.msra.mxu0 0.0
    %240 = vmatpush.msra.mxu0 %v83
    %241 = vmatmul.f32.gmra.mxu0 %v58
    %v242 = vpop.f32.mrf.mxu0
    %v243 = vadd.f32 %v47, %v242
    %244 = vdwg.mxu0
    %v245 = vmul.f32 %v103, 0.17677669
    %v246 = vmul.f32 %v123, 0.17677669
    %v248 = vrot.slane %v37, 5
    %250 = vmatpush.xpose.msra.mxu0 0.0
    %251 = vmatpush.xpose.msra.mxu0 0.0
    %252 = vmatpush.xpose.msra.mxu0 0.0
    %253 = vmatpush.xpose.msra.mxu0 0.0
    %254 = vmatpush.xpose.msra.mxu0 0.0
    %255 = vmatpush.xpose.msra.mxu0 0.0
    %256 = vmatpush.xpose.msra.mxu0 0.0
    %257 = vmatpush.xpose.msra.mxu0 0.0
    %258 = vmatpush.xpose.msra.mxu0 0.0
    %259 = vmatpush.xpose.msra.mxu0 0.0
    %260 = vmatpush.xpose.msra.mxu0 0.0
    %261 = vmatpush.xpose.msra.mxu0 0.0
    %262 = vmatpush.xpose.msra.mxu0 0.0
    %263 = vmatpush.xpose.msra.mxu0 0.0
    %264 = vmatpush.xpose.msra.mxu0 0.0
    %265 = vmatpush.xpose.msra.mxu0 %v248
    %266 = vmatmul.f32.gmra.mxu0 %v245
    %v267 = vpop.f32.mrf.mxu0
    %v268 = vadd.f32 0.0, %v267
    %269 = vdwg.mxu0
    %271 = vset.pattern.permute.xlu0 0
    %272 = vperm.xlu0 %271, %v268
    %v273 = vpop.permute.xlu0 %272
    %v275 = vmul.f32 %v273, %v22
    %276 = vmatpush.xpose.msra.mxu0 0.0
    %277 = vmatpush.xpose.msra.mxu0 0.0
    %278 = vmatpush.xpose.msra.mxu0 0.0
    %279 = vmatpush.xpose.msra.mxu0 0.0
    %280 = vmatpush.xpose.msra.mxu0 0.0
    %281 = vmatpush.xpose.msra.mxu0 0.0
    %282 = vmatpush.xpose.msra.mxu0 0.0
    %283 = vmatpush.xpose.msra.mxu0 0.0
    %284 = vmatpush.xpose.msra.mxu0 0.0
    %285 = vmatpush.xpose.msra.mxu0 0.0
    %286 = vmatpush.xpose.msra.mxu0 0.0
    %287 = vmatpush.xpose.msra.mxu0 0.0
    %288 = vmatpush.xpose.msra.mxu0 0.0
    %289 = vmatpush.xpose.msra.mxu0 0.0
    %290 = vmatpush.xpose.msra.mxu0 0.0
    %291 = vmatpush.xpose.msra.mxu0 %v143
    %292 = vmatmul.f32.gmra.mxu0 %v245
    %v293 = vpop.f32.mrf.mxu0
    %v294 = vadd.f32 %v275, %v293
    %295 = vdwg.mxu0
    %296 = vset.pattern.permute.xlu0 1
    %297 = vperm.xlu0 %296, %v268
    %v298 = vpop.permute.xlu0 %297
    %v300 = vmul.f32 %v298, %v23
    %v301 = vadd.f32 %v294, %v300
    %v302 = vadd.f32 %v301, %v21
    %vm303 = vcmask 64512
    %v304 = vsel %vm303, %v302, -inf
    %305 = vmax.xlane.f32.xlu0 %v304
    %v306 = vpop.xlane.xlu0 %305
    %v307 = vmax.f32 %v306, -1e+20
    %v308 = vsub.f32 %v302, %v307
    %v309 = vmul.f32 %v308, 1.442695
    %v310 = vpow.pop %v309
    %v311 = vsel %vm303, %v310, 0.0
    %312 = vadd.xlane.f32.xlu0 %v311
    %v313 = vpop.xlane.xlu0 %312
    %vm314 = vcmp.gt.f32.partialorder %v313, 0.0
    %v315 = vsel %vm314, %v313, 1.0
    %v316 = vrcp.pop %v315
    %v317 = vmul.f32 %v315, %v316
    %v318 = vsub.f32 1.0, %v317
    %v319 = vmul.f32 %v316, %v318
    %v320 = vadd.f32 %v316, %v319
    %vm321 = vweird.f32 %v315
    %vm322 = vweird.f32 %v316
    %vm323 = vmor %vm321, %vm322
    %v324 = vsel %vm323, %v316, %v320
    %v325 = vand.u32 2147483647, %v315
    %vm326 = vcmp.eq.f32.partialorder %v325, 8.507059e+37
    %v327 = vand.u32 %v315, 2147483648
    %v328 = vor.u32 1.1754944e-38, %v327
    %v329 = vsel %vm326, %v328, %v324
    %v330 = vmul.f32 %v310, %v329
    %v331 = vmul.f32 %v330, %v22
    %v332 = vsel %vm303, %v331, 0.0
    %333 = vadd.xlane.f32.xlu0 %v332
    %v334 = vpop.xlane.xlu0 %333
    %v335 = vmul.f32 %v330, %v23
    %v336 = vsel %vm303, %v335, 0.0
    %337 = vadd.xlane.f32.xlu0 %v336
    %v338 = vpop.xlane.xlu0 %337
    %vm339 = vcmask 7168
    %v340 = vsel %vm339, %v334, %v338
    %vm341 = vcmask 15360
    %v343 = vsel %vm341, %v340, 0
    %vm345 = vcmask 1041408
    %v346 = vsel %vm345, %v248, 0
    %348 = vmatpush.msra.mxu0 0.0
    %349 = vmatpush.msra.mxu0 0.0
    %350 = vmatpush.msra.mxu0 0.0
    %351 = vmatpush.msra.mxu0 0.0
    %352 = vmatpush.msra.mxu0 0.0
    %353 = vmatpush.msra.mxu0 0.0
    %354 = vmatpush.msra.mxu0 0.0
    %355 = vmatpush.msra.mxu0 0.0
    %356 = vmatpush.msra.mxu0 0.0
    %357 = vmatpush.msra.mxu0 0.0
    %358 = vmatpush.msra.mxu0 0.0
    %359 = vmatpush.msra.mxu0 0.0
    %360 = vmatpush.msra.mxu0 0.0
    %361 = vmatpush.msra.mxu0 0.0
    %362 = vmatpush.msra.mxu0 0.0
    %363 = vmatpush.msra.mxu0 %v346
    %364 = vmatmul.f32.gmra.mxu0 %v343
    %v365 = vpop.f32.mrf.mxu0
    %v366 = vadd.f32 0.0, %v365
    %367 = vdwg.mxu0
    %v369 = vsel %vm303, %v330, 0
    %371 = vmatpush.msra.mxu0 0.0
    %372 = vmatpush.msra.mxu0 0.0
    %373 = vmatpush.msra.mxu0 0.0
    %374 = vmatpush.msra.mxu0 0.0
    %375 = vmatpush.msra.mxu0 0.0
    %376 = vmatpush.msra.mxu0 0.0
    %377 = vmatpush.msra.mxu0 0.0
    %378 = vmatpush.msra.mxu0 0.0
    %379 = vmatpush.msra.mxu0 0.0
    %380 = vmatpush.msra.mxu0 0.0
    %381 = vmatpush.msra.mxu0 0.0
    %382 = vmatpush.msra.mxu0 0.0
    %383 = vmatpush.msra.mxu0 0.0
    %384 = vmatpush.msra.mxu0 0.0
    %385 = vmatpush.msra.mxu0 0.0
    %386 = vmatpush.msra.mxu0 %v183
    %387 = vmatmul.f32.gmra.mxu0 %v369
    %v388 = vpop.f32.mrf.mxu0
    %v389 = vadd.f32 %v366, %v388
    %390 = vdwg.mxu0
    %v391 = vadd.f32 %v389, %v223
    %v393 = vrot.slane %v38, 5
    %395 = vmatpush.xpose.msra.mxu0 0.0
    %396 = vmatpush.xpose.msra.mxu0 0.0
    %397 = vmatpush.xpose.msra.mxu0 0.0
    %398 = vmatpush.xpose.msra.mxu0 0.0
    %399 = vmatpush.xpose.msra.mxu0 0.0
    %400 = vmatpush.xpose.msra.mxu0 0.0
    %401 = vmatpush.xpose.msra.mxu0 0.0
    %402 = vmatpush.xpose.msra.mxu0 0.0
    %403 = vmatpush.xpose.msra.mxu0 0.0
    %404 = vmatpush.xpose.msra.mxu0 0.0
    %405 = vmatpush.xpose.msra.mxu0 0.0
    %406 = vmatpush.xpose.msra.mxu0 0.0
    %407 = vmatpush.xpose.msra.mxu0 0.0
    %408 = vmatpush.xpose.msra.mxu0 0.0
    %409 = vmatpush.xpose.msra.mxu0 0.0
    %410 = vmatpush.xpose.msra.mxu0 %v393
    %411 = vmatmul.f32.gmra.mxu0 %v246
    %v412 = vpop.f32.mrf.mxu0
    %v413 = vadd.f32 0.0, %v412
    %414 = vdwg.mxu0
    %416 = vset.pattern.permute.xlu0 0
    %417 = vperm.xlu0 %416, %v413
    %v418 = vpop.permute.xlu0 %417
    %v420 = vmul.f32 %v418, %v22
    %421 = vmatpush.xpose.msra.mxu0 0.0
    %422 = vmatpush.xpose.msra.mxu0 0.0
    %423 = vmatpush.xpose.msra.mxu0 0.0
    %424 = vmatpush.xpose.msra.mxu0 0.0
    %425 = vmatpush.xpose.msra.mxu0 0.0
    %426 = vmatpush.xpose.msra.mxu0 0.0
    %427 = vmatpush.xpose.msra.mxu0 0.0
    %428 = vmatpush.xpose.msra.mxu0 0.0
    %429 = vmatpush.xpose.msra.mxu0 0.0
    %430 = vmatpush.xpose.msra.mxu0 0.0
    %431 = vmatpush.xpose.msra.mxu0 0.0
    %432 = vmatpush.xpose.msra.mxu0 0.0
    %433 = vmatpush.xpose.msra.mxu0 0.0
    %434 = vmatpush.xpose.msra.mxu0 0.0
    %435 = vmatpush.xpose.msra.mxu0 0.0
    %436 = vmatpush.xpose.msra.mxu0 %v163
    %437 = vmatmul.f32.gmra.mxu0 %v246
    %v438 = vpop.f32.mrf.mxu0
    %v439 = vadd.f32 %v420, %v438
    %440 = vdwg.mxu0
    %441 = vset.pattern.permute.xlu0 1
    %442 = vperm.xlu0 %441, %v413
    %v443 = vpop.permute.xlu0 %442
    %v445 = vmul.f32 %v443, %v23
    %v446 = vadd.f32 %v439, %v445
    %v447 = vadd.f32 %v446, %v21
    %v448 = vsel %vm303, %v447, -inf
    %449 = vmax.xlane.f32.xlu0 %v448
    %v450 = vpop.xlane.xlu0 %449
    %v451 = vmax.f32 %v450, -1e+20
    %v452 = vsub.f32 %v447, %v451
    %v453 = vmul.f32 %v452, 1.442695
    %v454 = vpow.pop %v453
    %v455 = vsel %vm303, %v454, 0.0
    %456 = vadd.xlane.f32.xlu0 %v455
    %v457 = vpop.xlane.xlu0 %456
    %vm458 = vcmp.gt.f32.partialorder %v457, 0.0
    %v459 = vsel %vm458, %v457, 1.0
    %v460 = vrcp.pop %v459
    %v461 = vmul.f32 %v459, %v460
    %v462 = vsub.f32 1.0, %v461
    %v463 = vmul.f32 %v460, %v462
    %v464 = vadd.f32 %v460, %v463
    %vm465 = vweird.f32 %v459
    %vm466 = vweird.f32 %v460
    %vm467 = vmor %vm465, %vm466
    %v468 = vsel %vm467, %v460, %v464
    %v469 = vand.u32 2147483647, %v459
    %vm470 = vcmp.eq.f32.partialorder %v469, 8.507059e+37
    %v471 = vand.u32 %v459, 2147483648
    %v472 = vor.u32 1.1754944e-38, %v471
    %v473 = vsel %vm470, %v472, %v468
    %v474 = vmul.f32 %v454, %v473
    %v475 = vmul.f32 %v474, %v22
    %v476 = vsel %vm303, %v475, 0.0
    %477 = vadd.xlane.f32.xlu0 %v476
    %v478 = vpop.xlane.xlu0 %477
    %v479 = vmul.f32 %v474, %v23
    %v480 = vsel %vm303, %v479, 0.0
    %481 = vadd.xlane.f32.xlu0 %v480
    %v482 = vpop.xlane.xlu0 %481
    %v483 = vsel %vm339, %v478, %v482
    %v485 = vsel %vm341, %v483, 0
    %v487 = vsel %vm345, %v393, 0
    %489 = vmatpush.msra.mxu0 0.0
    %490 = vmatpush.msra.mxu0 0.0
    %491 = vmatpush.msra.mxu0 0.0
    %492 = vmatpush.msra.mxu0 0.0
    %493 = vmatpush.msra.mxu0 0.0
    %494 = vmatpush.msra.mxu0 0.0
    %495 = vmatpush.msra.mxu0 0.0
    %496 = vmatpush.msra.mxu0 0.0
    %497 = vmatpush.msra.mxu0 0.0
    %498 = vmatpush.msra.mxu0 0.0
    %499 = vmatpush.msra.mxu0 0.0
    %500 = vmatpush.msra.mxu0 0.0
    %501 = vmatpush.msra.mxu0 0.0
    %502 = vmatpush.msra.mxu0 0.0
    %503 = vmatpush.msra.mxu0 0.0
    %504 = vmatpush.msra.mxu0 %v487
    %505 = vmatmul.f32.gmra.mxu0 %v485
    %v506 = vpop.f32.mrf.mxu0
    %v507 = vadd.f32 0.0, %v506
    %508 = vdwg.mxu0
    %v510 = vsel %vm303, %v474, 0
    %512 = vmatpush.msra.mxu0 0.0
    %513 = vmatpush.msra.mxu0 0.0
    %514 = vmatpush.msra.mxu0 0.0
    %515 = vmatpush.msra.mxu0 0.0
    %516 = vmatpush.msra.mxu0 0.0
    %517 = vmatpush.msra.mxu0 0.0
    %518 = vmatpush.msra.mxu0 0.0
    %519 = vmatpush.msra.mxu0 0.0
    %520 = vmatpush.msra.mxu0 0.0
    %521 = vmatpush.msra.mxu0 0.0
    %522 = vmatpush.msra.mxu0 0.0
    %523 = vmatpush.msra.mxu0 0.0
    %524 = vmatpush.msra.mxu0 0.0
    %525 = vmatpush.msra.mxu0 0.0
    %526 = vmatpush.msra.mxu0 0.0
    %527 = vmatpush.msra.mxu0 %v203
    %528 = vmatmul.f32.gmra.mxu0 %v510
    %v529 = vpop.f32.mrf.mxu0
    %v530 = vadd.f32 %v507, %v529
    %531 = vdwg.mxu0
    %v532 = vadd.f32 %v530, %v243
    %vm533 = vcmp.ge.f32.partialorder %v391, 0.0
    %vm534 = vcmp.ge.f32.partialorder %v532, 0.0
    %v535 = vmul.f32 %v391, 0.01
    %v536 = vmul.f32 %v532, 0.01
    %v537 = vsel %vm533, %v391, %v535
    %v538 = vsel %vm534, %v532, %v536
    %v539 = vld [vmem:[%s3] sm:$0xff]
    %v540 = vld [vmem:[%s3 + $0x8] sm:$0xff]
    %v541 = vld [vmem:[%s3 + $0x10] sm:$0xff]
    %v542 = vld [vmem:[%s3 + $0x18] sm:$0xff]
    %v543 = vld [vmem:[%s3 + $0x20] sm:$0xff]
    %v544 = vld [vmem:[%s3 + $0x28] sm:$0xff]
    %v545 = vld [vmem:[%s3 + $0x30] sm:$0xff]
    %v546 = vld [vmem:[%s3 + $0x38] sm:$0xff]
    %v547 = vld [vmem:[%s3 + $0x40] sm:$0xff]
    %v548 = vld [vmem:[%s3 + $0x48] sm:$0xff]
    %v549 = vld [vmem:[%s3 + $0x50] sm:$0xff]
    %v550 = vld [vmem:[%s3 + $0x58] sm:$0xff]
    %v551 = vld [vmem:[%s3 + $0x60] sm:$0xff]
    %v552 = vld [vmem:[%s3 + $0x68] sm:$0xff]
    %v553 = vld [vmem:[%s3 + $0x70] sm:$0xff]
    %v554 = vld [vmem:[%s3 + $0x78] sm:$0xff]
    %v555 = vld [vmem:[%s3 + $0x80] sm:$0xff]
    %v556 = vld [vmem:[%s3 + $0x88] sm:$0xff]
    %v557 = vld [vmem:[%s3 + $0x90] sm:$0xff]
    %v558 = vld [vmem:[%s3 + $0x98] sm:$0xff]
    %v559 = vld [vmem:[%s3 + $0xa0] sm:$0xff]
    %v560 = vld [vmem:[%s3 + $0xa8] sm:$0xff]
    %v561 = vld [vmem:[%s3 + $0xb0] sm:$0xff]
    %v562 = vld [vmem:[%s3 + $0xb8] sm:$0xff]
    %v563 = vld [vmem:[%s3 + $0xc0] sm:$0xff]
    %v564 = vld [vmem:[%s3 + $0xc8] sm:$0xff]
    %v565 = vld [vmem:[%s3 + $0xd0] sm:$0xff]
    %v566 = vld [vmem:[%s3 + $0xd8] sm:$0xff]
    %v567 = vld [vmem:[%s3 + $0xe0] sm:$0xff]
    %v568 = vld [vmem:[%s3 + $0xe8] sm:$0xff]
    %v569 = vld [vmem:[%s3 + $0xf0] sm:$0xff]
    %v570 = vld [vmem:[%s3 + $0xf8] sm:$0xff]
    %v571 = vld [vmem:[%s3 + $0x100] sm:$0xff]
    %v572 = vld [vmem:[%s3 + $0x108] sm:$0xff]
    %v573 = vld [vmem:[%s3 + $0x110] sm:$0xff]
    %v574 = vld [vmem:[%s3 + $0x118] sm:$0xff]
    %v575 = vld [vmem:[%s3 + $0x120] sm:$0xff]
    %v576 = vld [vmem:[%s3 + $0x128] sm:$0xff]
    %v577 = vld [vmem:[%s3 + $0x130] sm:$0xff]
    %v578 = vld [vmem:[%s3 + $0x138] sm:$0xff]
    %v579 = vld [vmem:[%s3 + $0x140] sm:$0xff]
    %v580 = vld [vmem:[%s3 + $0x148] sm:$0xff]
    %v581 = vld [vmem:[%s3 + $0x150] sm:$0xff]
    %v582 = vld [vmem:[%s3 + $0x158] sm:$0xff]
    %v583 = vld [vmem:[%s3 + $0x160] sm:$0xff]
    %v584 = vld [vmem:[%s3 + $0x168] sm:$0xff]
    %v585 = vld [vmem:[%s3 + $0x170] sm:$0xff]
    %v586 = vld [vmem:[%s3 + $0x178] sm:$0xff]
    %v587 = vld [vmem:[%s3 + $0x180] sm:$0xff]
    %v588 = vld [vmem:[%s3 + $0x188] sm:$0xff]
    %v589 = vld [vmem:[%s3 + $0x190] sm:$0xff]
    %v590 = vld [vmem:[%s3 + $0x198] sm:$0xff]
    %v591 = vld [vmem:[%s3 + $0x1a0] sm:$0xff]
    %v592 = vld [vmem:[%s3 + $0x1a8] sm:$0xff]
    %v593 = vld [vmem:[%s3 + $0x1b0] sm:$0xff]
    %v594 = vld [vmem:[%s3 + $0x1b8] sm:$0xff]
    %v595 = vld [vmem:[%s3 + $0x1c0] sm:$0xff]
    %v596 = vld [vmem:[%s3 + $0x1c8] sm:$0xff]
    %v597 = vld [vmem:[%s3 + $0x1d0] sm:$0xff]
    %v598 = vld [vmem:[%s3 + $0x1d8] sm:$0xff]
    %v599 = vld [vmem:[%s3 + $0x1e0] sm:$0xff]
    %v600 = vld [vmem:[%s3 + $0x1e8] sm:$0xff]
    %v601 = vld [vmem:[%s3 + $0x1f0] sm:$0xff]
    %v602 = vld [vmem:[%s3 + $0x1f8] sm:$0xff]
    %v603 = vld [vmem:[%s3 + $0x200] sm:$0xff]
    %v604 = vld [vmem:[%s3 + $0x208] sm:$0xff]
    %v605 = vld [vmem:[%s3 + $0x210] sm:$0xff]
    %v606 = vld [vmem:[%s3 + $0x218] sm:$0xff]
    %v607 = vld [vmem:[%s3 + $0x220] sm:$0xff]
    %v608 = vld [vmem:[%s3 + $0x228] sm:$0xff]
    %v609 = vld [vmem:[%s3 + $0x230] sm:$0xff]
    %v610 = vld [vmem:[%s3 + $0x238] sm:$0xff]
    %v611 = vld [vmem:[%s3 + $0x240] sm:$0xff]
    %v612 = vld [vmem:[%s3 + $0x248] sm:$0xff]
    %v613 = vld [vmem:[%s3 + $0x250] sm:$0xff]
    %v614 = vld [vmem:[%s3 + $0x258] sm:$0xff]
    %v615 = vld [vmem:[%s3 + $0x260] sm:$0xff]
    %v616 = vld [vmem:[%s3 + $0x268] sm:$0xff]
    %v617 = vld [vmem:[%s3 + $0x270] sm:$0xff]
    %v618 = vld [vmem:[%s3 + $0x278] sm:$0xff]
    %v619 = vld [vmem:[%s3 + $0x280] sm:$0xff]
    %v620 = vld [vmem:[%s3 + $0x288] sm:$0xff]
    %v621 = vld [vmem:[%s3 + $0x290] sm:$0xff]
    %v622 = vld [vmem:[%s3 + $0x298] sm:$0xff]
    %v623 = vld [vmem:[%s3 + $0x2a0] sm:$0xff]
    %v624 = vld [vmem:[%s3 + $0x2a8] sm:$0xff]
    %v625 = vld [vmem:[%s3 + $0x2b0] sm:$0xff]
    %v626 = vld [vmem:[%s3 + $0x2b8] sm:$0xff]
    %v627 = vld [vmem:[%s3 + $0x2c0] sm:$0xff]
    %v628 = vld [vmem:[%s3 + $0x2c8] sm:$0xff]
    %v629 = vld [vmem:[%s3 + $0x2d0] sm:$0xff]
    %v630 = vld [vmem:[%s3 + $0x2d8] sm:$0xff]
    %v631 = vld [vmem:[%s3 + $0x2e0] sm:$0xff]
    %v632 = vld [vmem:[%s3 + $0x2e8] sm:$0xff]
    %v633 = vld [vmem:[%s3 + $0x2f0] sm:$0xff]
    %v634 = vld [vmem:[%s3 + $0x2f8] sm:$0xff]
    %v635 = vld [vmem:[%s3 + $0x300] sm:$0xff]
    %v636 = vld [vmem:[%s3 + $0x308] sm:$0xff]
    %v637 = vld [vmem:[%s3 + $0x310] sm:$0xff]
    %v638 = vld [vmem:[%s3 + $0x318] sm:$0xff]
    %v639 = vld [vmem:[%s3 + $0x320] sm:$0xff]
    %v640 = vld [vmem:[%s3 + $0x328] sm:$0xff]
    %v641 = vld [vmem:[%s3 + $0x330] sm:$0xff]
    %v642 = vld [vmem:[%s3 + $0x338] sm:$0xff]
    %v643 = vld [vmem:[%s3 + $0x340] sm:$0xff]
    %v644 = vld [vmem:[%s3 + $0x348] sm:$0xff]
    %v645 = vld [vmem:[%s3 + $0x350] sm:$0xff]
    %v646 = vld [vmem:[%s3 + $0x358] sm:$0xff]
    %v647 = vld [vmem:[%s3 + $0x360] sm:$0xff]
    %v648 = vld [vmem:[%s3 + $0x368] sm:$0xff]
    %v649 = vld [vmem:[%s3 + $0x370] sm:$0xff]
    %v650 = vld [vmem:[%s3 + $0x378] sm:$0xff]
    %v651 = vld [vmem:[%s3 + $0x380] sm:$0xff]
    %v652 = vld [vmem:[%s3 + $0x388] sm:$0xff]
    %v653 = vld [vmem:[%s3 + $0x390] sm:$0xff]
    %v654 = vld [vmem:[%s3 + $0x398] sm:$0xff]
    %v655 = vld [vmem:[%s3 + $0x3a0] sm:$0xff]
    %v656 = vld [vmem:[%s3 + $0x3a8] sm:$0xff]
    %v657 = vld [vmem:[%s3 + $0x3b0] sm:$0xff]
    %v658 = vld [vmem:[%s3 + $0x3b8] sm:$0xff]
    %v659 = vld [vmem:[%s3 + $0x3c0] sm:$0xff]
    %v660 = vld [vmem:[%s3 + $0x3c8] sm:$0xff]
    %v661 = vld [vmem:[%s3 + $0x3d0] sm:$0xff]
    %v662 = vld [vmem:[%s3 + $0x3d8] sm:$0xff]
    %v663 = vld [vmem:[%s3 + $0x3e0] sm:$0xff]
    %v664 = vld [vmem:[%s3 + $0x3e8] sm:$0xff]
    %v665 = vld [vmem:[%s3 + $0x3f0] sm:$0xff]
    %v666 = vld [vmem:[%s3 + $0x3f8] sm:$0xff]
    %s667 = scalar_lea.vmem %s3, 1024
    %v668 = vld [vmem:[%s667] ss:$8 sm:$0xf]
    %v669 = vld [vmem:[%s3 + $0x400] sm:$0x6]
    %v671 = vperm.slane %v668, 0
    %v672 = vperm.slane %v668, 1
    %v673 = vperm.slane %v668, 2
    %v674 = vperm.slane %v668, 3
    %679 = vmatpush.msra.mxu0 %v599
    %680 = vmatpush.msra.mxu0 %v595
    %681 = vmatpush.msra.mxu0 %v591
    %682 = vmatpush.msra.mxu0 %v587
    %683 = vmatpush.msra.mxu0 %v583
    %684 = vmatpush.msra.mxu0 %v579
    %685 = vmatpush.msra.mxu0 %v575
    %686 = vmatpush.msra.mxu0 %v571
    %687 = vmatpush.msra.mxu0 %v567
    %688 = vmatpush.msra.mxu0 %v563
    %689 = vmatpush.msra.mxu0 %v559
    %690 = vmatpush.msra.mxu0 %v555
    %691 = vmatpush.msra.mxu0 %v551
    %692 = vmatpush.msra.mxu0 %v547
    %693 = vmatpush.msra.mxu0 %v543
    %694 = vmatpush.msra.mxu0 %v539
    %695 = vmatmul.f32.gmra.mxu0 %v537
    %v696 = vpop.f32.mrf.mxu0
    %v697 = vadd.f32 %v671, %v696
    %698 = vdwg.mxu0
    %699 = vmatpush.msra.mxu0 %v663
    %700 = vmatpush.msra.mxu0 %v659
    %701 = vmatpush.msra.mxu0 %v655
    %702 = vmatpush.msra.mxu0 %v651
    %703 = vmatpush.msra.mxu0 %v647
    %704 = vmatpush.msra.mxu0 %v643
    %705 = vmatpush.msra.mxu0 %v639
    %706 = vmatpush.msra.mxu0 %v635
    %707 = vmatpush.msra.mxu0 %v631
    %708 = vmatpush.msra.mxu0 %v627
    %709 = vmatpush.msra.mxu0 %v623
    %710 = vmatpush.msra.mxu0 %v619
    %711 = vmatpush.msra.mxu0 %v615
    %712 = vmatpush.msra.mxu0 %v611
    %713 = vmatpush.msra.mxu0 %v607
    %714 = vmatpush.msra.mxu0 %v603
    %715 = vmatmul.f32.gmra.mxu0 %v538
    %v716 = vpop.f32.mrf.mxu0
    %v717 = vadd.f32 %v697, %v716
    %718 = vdwg.mxu0
    %719 = vmatpush.msra.mxu0 %v600
    %720 = vmatpush.msra.mxu0 %v596
    %721 = vmatpush.msra.mxu0 %v592
    %722 = vmatpush.msra.mxu0 %v588
    %723 = vmatpush.msra.mxu0 %v584
    %724 = vmatpush.msra.mxu0 %v580
    %725 = vmatpush.msra.mxu0 %v576
    %726 = vmatpush.msra.mxu0 %v572
    %727 = vmatpush.msra.mxu0 %v568
    %728 = vmatpush.msra.mxu0 %v564
    %729 = vmatpush.msra.mxu0 %v560
    %730 = vmatpush.msra.mxu0 %v556
    %731 = vmatpush.msra.mxu0 %v552
    %732 = vmatpush.msra.mxu0 %v548
    %733 = vmatpush.msra.mxu0 %v544
    %734 = vmatpush.msra.mxu0 %v540
    %735 = vmatmul.f32.gmra.mxu0 %v537
    %v736 = vpop.f32.mrf.mxu0
    %v737 = vadd.f32 %v672, %v736
    %738 = vdwg.mxu0
    %739 = vmatpush.msra.mxu0 %v664
    %740 = vmatpush.msra.mxu0 %v660
    %741 = vmatpush.msra.mxu0 %v656
    %742 = vmatpush.msra.mxu0 %v652
    %743 = vmatpush.msra.mxu0 %v648
    %744 = vmatpush.msra.mxu0 %v644
    %745 = vmatpush.msra.mxu0 %v640
    %746 = vmatpush.msra.mxu0 %v636
    %747 = vmatpush.msra.mxu0 %v632
    %748 = vmatpush.msra.mxu0 %v628
    %749 = vmatpush.msra.mxu0 %v624
    %750 = vmatpush.msra.mxu0 %v620
    %751 = vmatpush.msra.mxu0 %v616
    %752 = vmatpush.msra.mxu0 %v612
    %753 = vmatpush.msra.mxu0 %v608
    %754 = vmatpush.msra.mxu0 %v604
    %755 = vmatmul.f32.gmra.mxu0 %v538
    %v756 = vpop.f32.mrf.mxu0
    %v757 = vadd.f32 %v737, %v756
    %758 = vdwg.mxu0
    %759 = vmatpush.msra.mxu0 %v601
    %760 = vmatpush.msra.mxu0 %v597
    %761 = vmatpush.msra.mxu0 %v593
    %762 = vmatpush.msra.mxu0 %v589
    %763 = vmatpush.msra.mxu0 %v585
    %764 = vmatpush.msra.mxu0 %v581
    %765 = vmatpush.msra.mxu0 %v577
    %766 = vmatpush.msra.mxu0 %v573
    %767 = vmatpush.msra.mxu0 %v569
    %768 = vmatpush.msra.mxu0 %v565
    %769 = vmatpush.msra.mxu0 %v561
    %770 = vmatpush.msra.mxu0 %v557
    %771 = vmatpush.msra.mxu0 %v553
    %772 = vmatpush.msra.mxu0 %v549
    %773 = vmatpush.msra.mxu0 %v545
    %774 = vmatpush.msra.mxu0 %v541
    %775 = vmatmul.f32.gmra.mxu0 %v537
    %v776 = vpop.f32.mrf.mxu0
    %v777 = vadd.f32 %v673, %v776
    %778 = vdwg.mxu0
    %779 = vmatpush.msra.mxu0 %v665
    %780 = vmatpush.msra.mxu0 %v661
    %781 = vmatpush.msra.mxu0 %v657
    %782 = vmatpush.msra.mxu0 %v653
    %783 = vmatpush.msra.mxu0 %v649
    %784 = vmatpush.msra.mxu0 %v645
    %785 = vmatpush.msra.mxu0 %v641
    %786 = vmatpush.msra.mxu0 %v637
    %787 = vmatpush.msra.mxu0 %v633
    %788 = vmatpush.msra.mxu0 %v629
    %789 = vmatpush.msra.mxu0 %v625
    %790 = vmatpush.msra.mxu0 %v621
    %791 = vmatpush.msra.mxu0 %v617
    %792 = vmatpush.msra.mxu0 %v613
    %793 = vmatpush.msra.mxu0 %v609
    %794 = vmatpush.msra.mxu0 %v605
    %795 = vmatmul.f32.gmra.mxu0 %v538
    %v796 = vpop.f32.mrf.mxu0
    %v797 = vadd.f32 %v777, %v796
    %798 = vdwg.mxu0
    %799 = vmatpush.msra.mxu0 %v602
    %800 = vmatpush.msra.mxu0 %v598
    %801 = vmatpush.msra.mxu0 %v594
    %802 = vmatpush.msra.mxu0 %v590
    %803 = vmatpush.msra.mxu0 %v586
    %804 = vmatpush.msra.mxu0 %v582
    %805 = vmatpush.msra.mxu0 %v578
    %806 = vmatpush.msra.mxu0 %v574
    %807 = vmatpush.msra.mxu0 %v570
    %808 = vmatpush.msra.mxu0 %v566
    %809 = vmatpush.msra.mxu0 %v562
    %810 = vmatpush.msra.mxu0 %v558
    %811 = vmatpush.msra.mxu0 %v554
    %812 = vmatpush.msra.mxu0 %v550
    %813 = vmatpush.msra.mxu0 %v546
    %814 = vmatpush.msra.mxu0 %v542
    %815 = vmatmul.f32.gmra.mxu0 %v537
    %v816 = vpop.f32.mrf.mxu0
    %v817 = vadd.f32 %v674, %v816
    %818 = vdwg.mxu0
    %819 = vmatpush.msra.mxu0 %v666
    %820 = vmatpush.msra.mxu0 %v662
    %821 = vmatpush.msra.mxu0 %v658
    %822 = vmatpush.msra.mxu0 %v654
    %823 = vmatpush.msra.mxu0 %v650
    %824 = vmatpush.msra.mxu0 %v646
    %825 = vmatpush.msra.mxu0 %v642
    %826 = vmatpush.msra.mxu0 %v638
    %827 = vmatpush.msra.mxu0 %v634
    %828 = vmatpush.msra.mxu0 %v630
    %829 = vmatpush.msra.mxu0 %v626
    %830 = vmatpush.msra.mxu0 %v622
    %831 = vmatpush.msra.mxu0 %v618
    %832 = vmatpush.msra.mxu0 %v614
    %833 = vmatpush.msra.mxu0 %v610
    %834 = vmatpush.msra.mxu0 %v606
    %835 = vmatmul.f32.gmra.mxu0 %v538
    %v836 = vpop.f32.mrf.mxu0
    %v837 = vadd.f32 %v817, %v836
    %838 = vdwg.mxu0
    %v839 = vmul.f32 %v717, 0.17677669
    %v841 = vrot.slane %v669, 1
    %843 = vmatpush.xpose.msra.mxu0 0.0
    %844 = vmatpush.xpose.msra.mxu0 0.0
    %845 = vmatpush.xpose.msra.mxu0 0.0
    %846 = vmatpush.xpose.msra.mxu0 0.0
    %847 = vmatpush.xpose.msra.mxu0 0.0
    %848 = vmatpush.xpose.msra.mxu0 0.0
    %849 = vmatpush.xpose.msra.mxu0 0.0
    %850 = vmatpush.xpose.msra.mxu0 0.0
    %851 = vmatpush.xpose.msra.mxu0 0.0
    %852 = vmatpush.xpose.msra.mxu0 0.0
    %853 = vmatpush.xpose.msra.mxu0 0.0
    %854 = vmatpush.xpose.msra.mxu0 0.0
    %855 = vmatpush.xpose.msra.mxu0 0.0
    %856 = vmatpush.xpose.msra.mxu0 0.0
    %857 = vmatpush.xpose.msra.mxu0 0.0
    %858 = vmatpush.xpose.msra.mxu0 %v841
    %859 = vmatmul.f32.gmra.mxu0 %v839
    %v860 = vpop.f32.mrf.mxu0
    %v861 = vadd.f32 0.0, %v860
    %862 = vdwg.mxu0
    %864 = vset.pattern.permute.xlu0 0
    %865 = vperm.xlu0 %864, %v861
    %v866 = vpop.permute.xlu0 %865
    %v868 = vmul.f32 %v866, %v22
    %869 = vmatpush.xpose.msra.mxu0 0.0
    %870 = vmatpush.xpose.msra.mxu0 0.0
    %871 = vmatpush.xpose.msra.mxu0 0.0
    %872 = vmatpush.xpose.msra.mxu0 0.0
    %873 = vmatpush.xpose.msra.mxu0 0.0
    %874 = vmatpush.xpose.msra.mxu0 0.0
    %875 = vmatpush.xpose.msra.mxu0 0.0
    %876 = vmatpush.xpose.msra.mxu0 0.0
    %877 = vmatpush.xpose.msra.mxu0 0.0
    %878 = vmatpush.xpose.msra.mxu0 0.0
    %879 = vmatpush.xpose.msra.mxu0 0.0
    %880 = vmatpush.xpose.msra.mxu0 0.0
    %881 = vmatpush.xpose.msra.mxu0 0.0
    %882 = vmatpush.xpose.msra.mxu0 0.0
    %883 = vmatpush.xpose.msra.mxu0 0.0
    %884 = vmatpush.xpose.msra.mxu0 %v757
    %885 = vmatmul.f32.gmra.mxu0 %v839
    %v886 = vpop.f32.mrf.mxu0
    %v887 = vadd.f32 %v868, %v886
    %888 = vdwg.mxu0
    %889 = vset.pattern.permute.xlu0 1
    %890 = vperm.xlu0 %889, %v861
    %v891 = vpop.permute.xlu0 %890
    %v893 = vmul.f32 %v891, %v23
    %v894 = vadd.f32 %v887, %v893
    %v895 = vadd.f32 %v894, %v21
    %v896 = vsel %vm303, %v895, -inf
    %897 = vmax.xlane.f32.xlu0 %v896
    %v898 = vpop.xlane.xlu0 %897
    %v899 = vmax.f32 %v898, -1e+20
    %v900 = vsub.f32 %v895, %v899
    %v901 = vmul.f32 %v900, 1.442695
    %v902 = vpow.pop %v901
    %v903 = vsel %vm303, %v902, 0.0
    %904 = vadd.xlane.f32.xlu0 %v903
    %v905 = vpop.xlane.xlu0 %904
    %vm906 = vcmp.gt.f32.partialorder %v905, 0.0
    %v907 = vsel %vm906, %v905, 1.0
    %v908 = vrcp.pop %v907
    %v909 = vmul.f32 %v907, %v908
    %v910 = vsub.f32 1.0, %v909
    %v911 = vmul.f32 %v908, %v910
    %v912 = vadd.f32 %v908, %v911
    %vm913 = vweird.f32 %v907
    %vm914 = vweird.f32 %v908
    %vm915 = vmor %vm913, %vm914
    %v916 = vsel %vm915, %v908, %v912
    %v917 = vand.u32 2147483647, %v907
    %vm918 = vcmp.eq.f32.partialorder %v917, 8.507059e+37
    %v919 = vand.u32 %v907, 2147483648
    %v920 = vor.u32 1.1754944e-38, %v919
    %v921 = vsel %vm918, %v920, %v916
    %v922 = vmul.f32 %v902, %v921
    %v923 = vmul.f32 %v922, %v22
    %v924 = vsel %vm303, %v923, 0.0
    %925 = vadd.xlane.f32.xlu0 %v924
    %v926 = vpop.xlane.xlu0 %925
    %v927 = vmul.f32 %v922, %v23
    %v928 = vsel %vm303, %v927, 0.0
    %929 = vadd.xlane.f32.xlu0 %v928
    %v930 = vpop.xlane.xlu0 %929
    %v931 = vsel %vm339, %v926, %v930
    %v933 = vsel %vm341, %v931, 0
    %v935 = vsel %vm345, %v841, 0
    %937 = vmatpush.msra.mxu0 0.0
    %938 = vmatpush.msra.mxu0 0.0
    %939 = vmatpush.msra.mxu0 0.0
    %940 = vmatpush.msra.mxu0 0.0
    %941 = vmatpush.msra.mxu0 0.0
    %942 = vmatpush.msra.mxu0 0.0
    %943 = vmatpush.msra.mxu0 0.0
    %944 = vmatpush.msra.mxu0 0.0
    %945 = vmatpush.msra.mxu0 0.0
    %946 = vmatpush.msra.mxu0 0.0
    %947 = vmatpush.msra.mxu0 0.0
    %948 = vmatpush.msra.mxu0 0.0
    %949 = vmatpush.msra.mxu0 0.0
    %950 = vmatpush.msra.mxu0 0.0
    %951 = vmatpush.msra.mxu0 0.0
    %952 = vmatpush.msra.mxu0 %v935
    %953 = vmatmul.f32.gmra.mxu0 %v933
    %v954 = vpop.f32.mrf.mxu0
    %v955 = vadd.f32 0.0, %v954
    %956 = vdwg.mxu0
    %v958 = vsel %vm303, %v922, 0
    %960 = vmatpush.msra.mxu0 0.0
    %961 = vmatpush.msra.mxu0 0.0
    %962 = vmatpush.msra.mxu0 0.0
    %963 = vmatpush.msra.mxu0 0.0
    %964 = vmatpush.msra.mxu0 0.0
    %965 = vmatpush.msra.mxu0 0.0
    %966 = vmatpush.msra.mxu0 0.0
    %967 = vmatpush.msra.mxu0 0.0
    %968 = vmatpush.msra.mxu0 0.0
    %969 = vmatpush.msra.mxu0 0.0
    %970 = vmatpush.msra.mxu0 0.0
    %971 = vmatpush.msra.mxu0 0.0
    %972 = vmatpush.msra.mxu0 0.0
    %973 = vmatpush.msra.mxu0 0.0
    %974 = vmatpush.msra.mxu0 0.0
    %975 = vmatpush.msra.mxu0 %v797
    %976 = vmatmul.f32.gmra.mxu0 %v958
    %v977 = vpop.f32.mrf.mxu0
    %v978 = vadd.f32 %v955, %v977
    %979 = vdwg.mxu0
    %v980 = vadd.f32 %v978, %v837
    %vm981 = vcmp.ge.f32.partialorder %v980, 0.0
    %v982 = vmul.f32 %v980, 0.01
    %v983 = vsel %vm981, %v980, %v982
    %v984 = vld [vmem:[%s4] sm:$0xff]
    %v985 = vld [vmem:[%s4 + $0x8] sm:$0xff]
    %v986 = vld [vmem:[%s4 + $0x10] sm:$0xff]
    %v987 = vld [vmem:[%s4 + $0x18] sm:$0xff]
    %v988 = vld [vmem:[%s4 + $0x20] sm:$0xff]
    %v989 = vld [vmem:[%s4 + $0x28] sm:$0xff]
    %v990 = vld [vmem:[%s4 + $0x30] sm:$0xff]
    %v991 = vld [vmem:[%s4 + $0x38] sm:$0xff]
    %v992 = vld [vmem:[%s4 + $0x40] sm:$0xff]
    %v993 = vld [vmem:[%s4 + $0x48] sm:$0xff]
    %v994 = vld [vmem:[%s4 + $0x50] sm:$0xff]
    %v995 = vld [vmem:[%s4 + $0x58] sm:$0xff]
    %v996 = vld [vmem:[%s4 + $0x60] sm:$0xff]
    %v997 = vld [vmem:[%s4 + $0x68] sm:$0xff]
    %v998 = vld [vmem:[%s4 + $0x70] sm:$0xff]
    %v999 = vld [vmem:[%s4 + $0x78] sm:$0xff]
    %v1000 = vld [vmem:[%s4 + $0x80] sm:$0xff]
    %v1001 = vld [vmem:[%s4 + $0x88] sm:$0xff]
    %v1002 = vld [vmem:[%s4 + $0x90] sm:$0xff]
    %v1003 = vld [vmem:[%s4 + $0x98] sm:$0xff]
    %v1004 = vld [vmem:[%s4 + $0xa0] sm:$0xff]
    %v1005 = vld [vmem:[%s4 + $0xa8] sm:$0xff]
    %v1006 = vld [vmem:[%s4 + $0xb0] sm:$0xff]
    %v1007 = vld [vmem:[%s4 + $0xb8] sm:$0xff]
    %v1008 = vld [vmem:[%s4 + $0xc0] sm:$0xff]
    %v1009 = vld [vmem:[%s4 + $0xc8] sm:$0xff]
    %v1010 = vld [vmem:[%s4 + $0xd0] sm:$0xff]
    %v1011 = vld [vmem:[%s4 + $0xd8] sm:$0xff]
    %v1012 = vld [vmem:[%s4 + $0xe0] sm:$0xff]
    %v1013 = vld [vmem:[%s4 + $0xe8] sm:$0xff]
    %v1014 = vld [vmem:[%s4 + $0xf0] sm:$0xff]
    %v1015 = vld [vmem:[%s4 + $0xf8] sm:$0xff]
    %v1016 = vld [vmem:[%s4 + $0x100] sm:$0xff]
    %v1017 = vld [vmem:[%s4 + $0x108] sm:$0xff]
    %v1018 = vld [vmem:[%s4 + $0x110] sm:$0xff]
    %v1019 = vld [vmem:[%s4 + $0x118] sm:$0xff]
    %v1020 = vld [vmem:[%s4 + $0x120] sm:$0xff]
    %v1021 = vld [vmem:[%s4 + $0x128] sm:$0xff]
    %v1022 = vld [vmem:[%s4 + $0x130] sm:$0xff]
    %v1023 = vld [vmem:[%s4 + $0x138] sm:$0xff]
    %v1024 = vld [vmem:[%s4 + $0x140] sm:$0xff]
    %v1025 = vld [vmem:[%s4 + $0x148] sm:$0xff]
    %v1026 = vld [vmem:[%s4 + $0x150] sm:$0xff]
    %v1027 = vld [vmem:[%s4 + $0x158] sm:$0xff]
    %v1028 = vld [vmem:[%s4 + $0x160] sm:$0xff]
    %v1029 = vld [vmem:[%s4 + $0x168] sm:$0xff]
    %v1030 = vld [vmem:[%s4 + $0x170] sm:$0xff]
    %v1031 = vld [vmem:[%s4 + $0x178] sm:$0xff]
    %v1032 = vld [vmem:[%s4 + $0x180] sm:$0xff]
    %v1033 = vld [vmem:[%s4 + $0x188] sm:$0xff]
    %v1034 = vld [vmem:[%s4 + $0x190] sm:$0xff]
    %v1035 = vld [vmem:[%s4 + $0x198] sm:$0xff]
    %v1036 = vld [vmem:[%s4 + $0x1a0] sm:$0xff]
    %v1037 = vld [vmem:[%s4 + $0x1a8] sm:$0xff]
    %v1038 = vld [vmem:[%s4 + $0x1b0] sm:$0xff]
    %v1039 = vld [vmem:[%s4 + $0x1b8] sm:$0xff]
    %v1040 = vld [vmem:[%s4 + $0x1c0] sm:$0xff]
    %v1041 = vld [vmem:[%s4 + $0x1c8] sm:$0xff]
    %v1042 = vld [vmem:[%s4 + $0x1d0] sm:$0xff]
    %v1043 = vld [vmem:[%s4 + $0x1d8] sm:$0xff]
    %v1044 = vld [vmem:[%s4 + $0x1e0] sm:$0xff]
    %v1045 = vld [vmem:[%s4 + $0x1e8] sm:$0xff]
    %v1046 = vld [vmem:[%s4 + $0x1f0] sm:$0xff]
    %v1047 = vld [vmem:[%s4 + $0x1f8] sm:$0xff]
    %s1048 = scalar_lea.vmem %s4, 512
    %v1049 = vld [vmem:[%s1048] ss:$8 sm:$0xf]
    %v1050 = vld [vmem:[%s4 + $0x200] sm:$0x6]
    %v1052 = vperm.slane %v1049, 0
    %v1053 = vperm.slane %v1049, 1
    %v1054 = vperm.slane %v1049, 2
    %v1055 = vperm.slane %v1049, 3
    %1060 = vmatpush.msra.mxu0 %v1044
    %1061 = vmatpush.msra.mxu0 %v1040
    %1062 = vmatpush.msra.mxu0 %v1036
    %1063 = vmatpush.msra.mxu0 %v1032
    %1064 = vmatpush.msra.mxu0 %v1028
    %1065 = vmatpush.msra.mxu0 %v1024
    %1066 = vmatpush.msra.mxu0 %v1020
    %1067 = vmatpush.msra.mxu0 %v1016
    %1068 = vmatpush.msra.mxu0 %v1012
    %1069 = vmatpush.msra.mxu0 %v1008
    %1070 = vmatpush.msra.mxu0 %v1004
    %1071 = vmatpush.msra.mxu0 %v1000
    %1072 = vmatpush.msra.mxu0 %v996
    %1073 = vmatpush.msra.mxu0 %v992
    %1074 = vmatpush.msra.mxu0 %v988
    %1075 = vmatpush.msra.mxu0 %v984
    %1076 = vmatmul.f32.gmra.mxu0 %v983
    %v1077 = vpop.f32.mrf.mxu0
    %v1078 = vadd.f32 %v1052, %v1077
    %1079 = vdwg.mxu0
    %1080 = vmatpush.msra.mxu0 %v1045
    %1081 = vmatpush.msra.mxu0 %v1041
    %1082 = vmatpush.msra.mxu0 %v1037
    %1083 = vmatpush.msra.mxu0 %v1033
    %1084 = vmatpush.msra.mxu0 %v1029
    %1085 = vmatpush.msra.mxu0 %v1025
    %1086 = vmatpush.msra.mxu0 %v1021
    %1087 = vmatpush.msra.mxu0 %v1017
    %1088 = vmatpush.msra.mxu0 %v1013
    %1089 = vmatpush.msra.mxu0 %v1009
    %1090 = vmatpush.msra.mxu0 %v1005
    %1091 = vmatpush.msra.mxu0 %v1001
    %1092 = vmatpush.msra.mxu0 %v997
    %1093 = vmatpush.msra.mxu0 %v993
    %1094 = vmatpush.msra.mxu0 %v989
    %1095 = vmatpush.msra.mxu0 %v985
    %1096 = vmatmul.f32.gmra.mxu0 %v983
    %v1097 = vpop.f32.mrf.mxu0
    %v1098 = vadd.f32 %v1053, %v1097
    %1099 = vdwg.mxu0
    %1100 = vmatpush.msra.mxu0 %v1046
    %1101 = vmatpush.msra.mxu0 %v1042
    %1102 = vmatpush.msra.mxu0 %v1038
    %1103 = vmatpush.msra.mxu0 %v1034
    %1104 = vmatpush.msra.mxu0 %v1030
    %1105 = vmatpush.msra.mxu0 %v1026
    %1106 = vmatpush.msra.mxu0 %v1022
    %1107 = vmatpush.msra.mxu0 %v1018
    %1108 = vmatpush.msra.mxu0 %v1014
    %1109 = vmatpush.msra.mxu0 %v1010
    %1110 = vmatpush.msra.mxu0 %v1006
    %1111 = vmatpush.msra.mxu0 %v1002
    %1112 = vmatpush.msra.mxu0 %v998
    %1113 = vmatpush.msra.mxu0 %v994
    %1114 = vmatpush.msra.mxu0 %v990
    %1115 = vmatpush.msra.mxu0 %v986
    %1116 = vmatmul.f32.gmra.mxu0 %v983
    %v1117 = vpop.f32.mrf.mxu0
    %v1118 = vadd.f32 %v1054, %v1117
    %1119 = vdwg.mxu0
    %1120 = vmatpush.msra.mxu0 %v1047
    %1121 = vmatpush.msra.mxu0 %v1043
    %1122 = vmatpush.msra.mxu0 %v1039
    %1123 = vmatpush.msra.mxu0 %v1035
    %1124 = vmatpush.msra.mxu0 %v1031
    %1125 = vmatpush.msra.mxu0 %v1027
    %1126 = vmatpush.msra.mxu0 %v1023
    %1127 = vmatpush.msra.mxu0 %v1019
    %1128 = vmatpush.msra.mxu0 %v1015
    %1129 = vmatpush.msra.mxu0 %v1011
    %1130 = vmatpush.msra.mxu0 %v1007
    %1131 = vmatpush.msra.mxu0 %v1003
    %1132 = vmatpush.msra.mxu0 %v999
    %1133 = vmatpush.msra.mxu0 %v995
    %1134 = vmatpush.msra.mxu0 %v991
    %1135 = vmatpush.msra.mxu0 %v987
    %1136 = vmatmul.f32.gmra.mxu0 %v983
    %v1137 = vpop.f32.mrf.mxu0
    %v1138 = vadd.f32 %v1055, %v1137
    %1139 = vdwg.mxu0
    %v1140 = vmul.f32 %v1078, 0.17677669
    %v1142 = vrot.slane %v1050, 1
    %1144 = vmatpush.xpose.msra.mxu0 0.0
    %1145 = vmatpush.xpose.msra.mxu0 0.0
    %1146 = vmatpush.xpose.msra.mxu0 0.0
    %1147 = vmatpush.xpose.msra.mxu0 0.0
    %1148 = vmatpush.xpose.msra.mxu0 0.0
    %1149 = vmatpush.xpose.msra.mxu0 0.0
    %1150 = vmatpush.xpose.msra.mxu0 0.0
    %1151 = vmatpush.xpose.msra.mxu0 0.0
    %1152 = vmatpush.xpose.msra.mxu0 0.0
    %1153 = vmatpush.xpose.msra.mxu0 0.0
    %1154 = vmatpush.xpose.msra.mxu0 0.0
    %1155 = vmatpush.xpose.msra.mxu0 0.0
    %1156 = vmatpush.xpose.msra.mxu0 0.0
    %1157 = vmatpush.xpose.msra.mxu0 0.0
    %1158 = vmatpush.xpose.msra.mxu0 0.0
    %1159 = vmatpush.xpose.msra.mxu0 %v1142
    %1160 = vmatmul.f32.gmra.mxu0 %v1140
    %v1161 = vpop.f32.mrf.mxu0
    %v1162 = vadd.f32 0.0, %v1161
    %1163 = vdwg.mxu0
    %1165 = vset.pattern.permute.xlu0 0
    %1166 = vperm.xlu0 %1165, %v1162
    %v1167 = vpop.permute.xlu0 %1166
    %v1169 = vmul.f32 %v1167, %v22
    %1170 = vmatpush.xpose.msra.mxu0 0.0
    %1171 = vmatpush.xpose.msra.mxu0 0.0
    %1172 = vmatpush.xpose.msra.mxu0 0.0
    %1173 = vmatpush.xpose.msra.mxu0 0.0
    %1174 = vmatpush.xpose.msra.mxu0 0.0
    %1175 = vmatpush.xpose.msra.mxu0 0.0
    %1176 = vmatpush.xpose.msra.mxu0 0.0
    %1177 = vmatpush.xpose.msra.mxu0 0.0
    %1178 = vmatpush.xpose.msra.mxu0 0.0
    %1179 = vmatpush.xpose.msra.mxu0 0.0
    %1180 = vmatpush.xpose.msra.mxu0 0.0
    %1181 = vmatpush.xpose.msra.mxu0 0.0
    %1182 = vmatpush.xpose.msra.mxu0 0.0
    %1183 = vmatpush.xpose.msra.mxu0 0.0
    %1184 = vmatpush.xpose.msra.mxu0 0.0
    %1185 = vmatpush.xpose.msra.mxu0 %v1098
    %1186 = vmatmul.f32.gmra.mxu0 %v1140
    %v1187 = vpop.f32.mrf.mxu0
    %v1188 = vadd.f32 %v1169, %v1187
    %1189 = vdwg.mxu0
    %1190 = vset.pattern.permute.xlu0 1
    %1191 = vperm.xlu0 %1190, %v1162
    %v1192 = vpop.permute.xlu0 %1191
    %v1194 = vmul.f32 %v1192, %v23
    %v1195 = vadd.f32 %v1188, %v1194
    %v1196 = vadd.f32 %v1195, %v21
    %v1197 = vsel %vm303, %v1196, -inf
    %1198 = vmax.xlane.f32.xlu0 %v1197
    %v1199 = vpop.xlane.xlu0 %1198
    %v1200 = vmax.f32 %v1199, -1e+20
    %v1201 = vsub.f32 %v1196, %v1200
    %v1202 = vmul.f32 %v1201, 1.442695
    %v1203 = vpow.pop %v1202
    %v1204 = vsel %vm303, %v1203, 0.0
    %1205 = vadd.xlane.f32.xlu0 %v1204
    %v1206 = vpop.xlane.xlu0 %1205
    %vm1207 = vcmp.gt.f32.partialorder %v1206, 0.0
    %v1208 = vsel %vm1207, %v1206, 1.0
    %v1209 = vrcp.pop %v1208
    %v1210 = vmul.f32 %v1208, %v1209
    %v1211 = vsub.f32 1.0, %v1210
    %v1212 = vmul.f32 %v1209, %v1211
    %v1213 = vadd.f32 %v1209, %v1212
    %vm1214 = vweird.f32 %v1208
    %vm1215 = vweird.f32 %v1209
    %vm1216 = vmor %vm1214, %vm1215
    %v1217 = vsel %vm1216, %v1209, %v1213
    %v1218 = vand.u32 2147483647, %v1208
    %vm1219 = vcmp.eq.f32.partialorder %v1218, 8.507059e+37
    %v1220 = vand.u32 %v1208, 2147483648
    %v1221 = vor.u32 1.1754944e-38, %v1220
    %v1222 = vsel %vm1219, %v1221, %v1217
    %v1223 = vmul.f32 %v1203, %v1222
    %v1224 = vmul.f32 %v1223, %v22
    %v1225 = vsel %vm303, %v1224, 0.0
    %1226 = vadd.xlane.f32.xlu0 %v1225
    %v1227 = vpop.xlane.xlu0 %1226
    %v1228 = vmul.f32 %v1223, %v23
    %v1229 = vsel %vm303, %v1228, 0.0
    %1230 = vadd.xlane.f32.xlu0 %v1229
    %v1231 = vpop.xlane.xlu0 %1230
    %v1232 = vsel %vm339, %v1227, %v1231
    %v1234 = vsel %vm341, %v1232, 0
    %v1236 = vsel %vm345, %v1142, 0
    %1238 = vmatpush.msra.mxu0 0.0
    %1239 = vmatpush.msra.mxu0 0.0
    %1240 = vmatpush.msra.mxu0 0.0
    %1241 = vmatpush.msra.mxu0 0.0
    %1242 = vmatpush.msra.mxu0 0.0
    %1243 = vmatpush.msra.mxu0 0.0
    %1244 = vmatpush.msra.mxu0 0.0
    %1245 = vmatpush.msra.mxu0 0.0
    %1246 = vmatpush.msra.mxu0 0.0
    %1247 = vmatpush.msra.mxu0 0.0
    %1248 = vmatpush.msra.mxu0 0.0
    %1249 = vmatpush.msra.mxu0 0.0
    %1250 = vmatpush.msra.mxu0 0.0
    %1251 = vmatpush.msra.mxu0 0.0
    %1252 = vmatpush.msra.mxu0 0.0
    %1253 = vmatpush.msra.mxu0 %v1236
    %1254 = vmatmul.f32.gmra.mxu0 %v1234
    %v1255 = vpop.f32.mrf.mxu0
    %v1256 = vadd.f32 0.0, %v1255
    %1257 = vdwg.mxu0
    %v1259 = vsel %vm303, %v1223, 0
    %1261 = vmatpush.msra.mxu0 0.0
    %1262 = vmatpush.msra.mxu0 0.0
    %1263 = vmatpush.msra.mxu0 0.0
    %1264 = vmatpush.msra.mxu0 0.0
    %1265 = vmatpush.msra.mxu0 0.0
    %1266 = vmatpush.msra.mxu0 0.0
    %1267 = vmatpush.msra.mxu0 0.0
    %1268 = vmatpush.msra.mxu0 0.0
    %1269 = vmatpush.msra.mxu0 0.0
    %1270 = vmatpush.msra.mxu0 0.0
    %1271 = vmatpush.msra.mxu0 0.0
    %1272 = vmatpush.msra.mxu0 0.0
    %1273 = vmatpush.msra.mxu0 0.0
    %1274 = vmatpush.msra.mxu0 0.0
    %1275 = vmatpush.msra.mxu0 0.0
    %1276 = vmatpush.msra.mxu0 %v1118
    %1277 = vmatmul.f32.gmra.mxu0 %v1259
    %v1278 = vpop.f32.mrf.mxu0
    %v1279 = vadd.f32 %v1256, %v1278
    %1280 = vdwg.mxu0
    %v1281 = vadd.f32 %v1279, %v1138
    %1282 = vst [vmem:[#allocation2] sm:$0xff] %v1281
    // Predicated region
    $region22: #{transform_forward.1} parent=1 // pred_check
      _
    $region23: #{transform_forward.1} parent=1 // pred_check_branch
      %1284 = sbr.rel (0) target = $region25
    $region24: #{transform_forward.1} parent=1 // pred_region
      %1286 = vsyncadd [#allocation3], 0
      %s1288 = sshll.u32 [#allocation2], 4
      %s1289 = int_to_ptr.vmem [resolvable:$true] %s1288
      %s1290 = sshll.u32 %s5, 4
      %s1291 = int_to_ptr.hbm [resolvable:$true] %s1290
      %1293 = dma.vmem_to_hbm [thread:$0]  %s1289, 128, %s1291, [#allocation3]
    $region25: #{transform_forward.1} parent=1 // pred_fallthru
      _
    // Predicated region
    $region26: #{transform_forward.1} parent=1 // pred_check
      _
    $region27: #{transform_forward.1} parent=1 // pred_check_branch
      %1295 = sbr.rel (0) target = $region29
    $region28: #{transform_forward.1} parent=1 // pred_region
      %1297 = dma.done [#allocation3], 128
    $region29: #{transform_forward.1} parent=1 // pred_fallthru
      _
    %1298 = vsyncpa [#allocation3], 1

</llo_original>
